<compile_context>
chip_gen: v7x
topology: tpu7x:2x2x1
jax: 0.10.0
libtpu: 0.0.40
codegen_flags: <defaults>
</compile_context>

<pallas_src>
import math

import jax
import jax.numpy as jnp
from jax.experimental import pallas as pl
from jax.experimental.pallas import tpu as pltpu  # noqa: F401  (TPU backend)

# ---- small, module-consistent sizes -----------------------------------------
B = 2            # batch
S = 8            # seq_len
D = 32           # d_model
H = 4            # heads
D_K = D // H     # per-head dim
F = 64           # d_ff
EPS = 1e-5       # nn.LayerNorm default
G = B * H        # flattened (batch, head)
BS = B * S       # flattened (batch, seq)


def _layer_norm(h, gamma, beta):
    mu = jnp.mean(h, axis=-1, keepdims=True)
    var = jnp.mean((h - mu) ** 2, axis=-1, keepdims=True)
    return (h - mu) * jax.lax.rsqrt(var + EPS) * gamma + beta


def encoder_layer_kernel(x_ref, bias_ref,
                         wqkv_ref, wo_ref,
                         w1_ref, b1_ref, w2_ref, b2_ref,
                         g1_ref, be1_ref, g2_ref, be2_ref,
                         o_ref):
    x = x_ref[...]                       # (BS, D) float32
    bias = bias_ref[...]                 # (G, 1, S) additive attention bias

    # --- fused Q|K|V projection: one (BS,D)@(D,3D) MXU matmul ----------------
    qkv = jnp.dot(x, wqkv_ref[...], preferred_element_type=jnp.float32)  # (BS, 3D)
    q = qkv[:, 0 * D:1 * D]              # (BS, D)  (already scaled by 1/sqrt(d_k))
    k = qkv[:, 1 * D:2 * D]
    v = qkv[:, 2 * D:3 * D]

    # --- gather per-(batch, head) tiles into a single batched (G, S, D_K) ----
    # layout so attention is two batched contractions rather than a per-head
    # loop of tiny matmuls with explicit transposes / concatenates.
    def per_head(t):
        tiles = [t[b * S:(b + 1) * S, h * D_K:(h + 1) * D_K]
                 for b in range(B) for h in range(H)]   # static slices, g = b*H + h
        return jnp.stack(tiles, axis=0)                  # (G, S, D_K)

    q3, k3, v3 = per_head(q), per_head(k), per_head(v)

    # scores: contract the head dim of Q and K in their stored layout (no .T).
    scores = jnp.einsum('gqd,gkd->gqk', q3, k3,
                        preferred_element_type=jnp.float32)   # (G, S, S)
    scores = scores + bias                                     # additive mask

    # softmax (max-subtracted; denominator via EUP approximate reciprocal)
    m = jnp.max(scores, axis=-1, keepdims=True)
    p = jnp.exp(scores - m)
    denom = jnp.sum(p, axis=-1, keepdims=True)
    w = p * pl.reciprocal(denom, approx=True)

    attn3 = jnp.einsum('gqk,gkd->gqd', w, v3,
                       preferred_element_type=jnp.float32)     # (G, S, D_K)

    # fold heads back: (G, S, D_K) -> (BS, D), then output projection
    attn = jnp.concatenate(
        [jnp.concatenate([attn3[b * H + h] for h in range(H)], axis=-1)
         for b in range(B)], axis=0)                           # (BS, D)
    attn = jnp.dot(attn, wo_ref[...], preferred_element_type=jnp.float32)

    # --- residual + LayerNorm 1 ----------------------------------------------
    h1 = _layer_norm(x + attn, g1_ref[...], be1_ref[...])

    # --- position-wise feed-forward -------------------------------------------
    f = jnp.dot(h1, w1_ref[...], preferred_element_type=jnp.float32) + b1_ref[...]
    f = jnp.maximum(f, 0.0)                                    # relu
    f = jnp.dot(f, w2_ref[...], preferred_element_type=jnp.float32) + b2_ref[...]

    # --- residual + LayerNorm 2 ----------------------------------------------
    o_ref[...] = _layer_norm(h1 + f, g2_ref[...], be2_ref[...]).astype(o_ref.dtype)


@jax.jit
def encoder_layer(x, mask, params):
    (wq, wk, wv, wo, w1, b1, w2, b2, g1, be1, g2, be2) = params

    # Wrapper-side prep (cheap XLA ops, done once per call):
    #   * flatten activations to one (B*S, D) tile -> single no-grid invocation
    #   * fuse Wq|Wk|Wv into one (D, 3D) weight, fold 1/sqrt(d_k) into Wq
    #   * turn the 0/1 mask into an additive -1e9 bias replicated per head
    x_flat = x.reshape(BS, D)
    scale = 1.0 / math.sqrt(D_K)
    wqkv = jnp.concatenate([wq * scale, wk, wv], axis=1)            # (D, 3D)
    bias = jnp.where(mask == 0, -1e9, 0.0).astype(jnp.float32)      # (B, 1, S)
    bias = jnp.repeat(bias, H, axis=0)                              # (G, 1, S), g = b*H + h

    out_flat = pl.pallas_call(
        encoder_layer_kernel,
        out_shape=jax.ShapeDtypeStruct((BS, D), jnp.float32),
        # no grid: whole-array operands resident in VMEM, single invocation
    )(x_flat, bias, wqkv, wo, w1, b1, w2, b2, g1, be1, g2, be2)
    return out_flat.reshape(B, S, D)


def reference_encoder_layer(x, mask, params):
    """Pure-JAX reference matching the PyTorch forward exactly."""
    (wq, wk, wv, wo, w1, b1, w2, b2, g1, be1, g2, be2) = params

    def ln(h, g, b):
        mu = jnp.mean(h, axis=-1, keepdims=True)
        var = jnp.mean((h - mu) ** 2, axis=-1, keepdims=True)
        return (h - mu) / jnp.sqrt(var + EPS) * g + b

    q = x @ wq; k = x @ wk; v = x @ wv
    q = q.reshape(B, S, H, D_K).transpose(0, 2, 1, 3)
    k = k.reshape(B, S, H, D_K).transpose(0, 2, 1, 3)
    v = v.reshape(B, S, H, D_K).transpose(0, 2, 1, 3)
    scores = jnp.einsum("bhqd,bhkd->bhqk", q, k) / math.sqrt(D_K)
    scores = jnp.where(mask[:, None, :, :] == 0, -jnp.inf, scores)
    w = jax.nn.softmax(scores, axis=-1)
    attn = jnp.einsum("bhqk,bhkd->bhqd", w, v).transpose(0, 2, 1, 3).reshape(B, S, D)
    attn = attn @ wo
    h1 = ln(x + attn, g1[0], be1[0])
    f = jnp.maximum(h1 @ w1 + b1[0], 0.0) @ w2 + b2[0]
    return ln(h1 + f, g2[0], be2[0])


if __name__ == "__main__":
    key = jax.random.PRNGKey(0)
    ks = jax.random.split(key, 9)

    # Deterministic synthetic parameters (nn.Linear weights pre-transposed to (in,out)).
    wq = jax.random.normal(ks[0], (D, D), jnp.float32) * 0.1
    wk = jax.random.normal(ks[1], (D, D), jnp.float32) * 0.1
    wv = jax.random.normal(ks[2], (D, D), jnp.float32) * 0.1
    wo = jax.random.normal(ks[3], (D, D), jnp.float32) * 0.1
    w1 = jax.random.normal(ks[4], (D, F), jnp.float32) * 0.1
    b1 = jax.random.normal(ks[5], (1, F), jnp.float32) * 0.1
    w2 = jax.random.normal(ks[6], (F, D), jnp.float32) * 0.1
    b2 = jax.random.normal(ks[7], (1, D), jnp.float32) * 0.1
    g1 = jnp.ones((1, D), jnp.float32)
    be1 = jnp.zeros((1, D), jnp.float32)
    g2 = jnp.ones((1, D), jnp.float32)
    be2 = jnp.zeros((1, D), jnp.float32)
    params = (wq, wk, wv, wo, w1, b1, w2, b2, g1, be1, g2, be2)

    x = jax.random.normal(ks[8], (B, S, D), jnp.float32)
    # mask of shape (B, 1, S): mask out the last key position of batch 1
    mask = jnp.ones((B, 1, S), jnp.float32).at[1, 0, S - 1].set(0.0)

    out = encoder_layer(x, mask, params)
    out = jax.block_until_ready(out)

    ref = reference_encoder_layer(x, mask, params)
    assert out.shape == (B, S, D)
    # tolerance accounts for the EUP approximate reciprocal in the softmax
    assert jnp.allclose(out, ref, rtol=5e-3, atol=5e-3), "mismatch vs reference"

    print("KERNEL_OK")
</pallas_src>

<mosaic_0001>
module attributes {stable_mosaic.version = 11 : i64} {
  func.func @encoder_layer_kernel(%arg0: memref<16x32xf32, #tpu.memory_space<vmem>>, %arg1: memref<8x1x8xf32, #tpu.memory_space<vmem>>, %arg2: memref<32x96xf32, #tpu.memory_space<vmem>>, %arg3: memref<32x32xf32, #tpu.memory_space<vmem>>, %arg4: memref<32x64xf32, #tpu.memory_space<vmem>>, %arg5: memref<1x64xf32, #tpu.memory_space<vmem>>, %arg6: memref<64x32xf32, #tpu.memory_space<vmem>>, %arg7: memref<1x32xf32, #tpu.memory_space<vmem>>, %arg8: memref<1x32xf32, #tpu.memory_space<vmem>>, %arg9: memref<1x32xf32, #tpu.memory_space<vmem>>, %arg10: memref<1x32xf32, #tpu.memory_space<vmem>>, %arg11: memref<1x32xf32, #tpu.memory_space<vmem>>, %arg12: memref<16x32xf32, #tpu.memory_space<vmem>>) attributes {dimension_semantics = [], scalar_prefetch = 0 : i64, scratch_operands = 0 : i64, tpu.core_type = #tpu.core_type<tc>} {
    %c0 = arith.constant 0 : index
    %c0_0 = arith.constant 0 : index
    %0 = vector.load %arg0[%c0, %c0_0] : memref<16x32xf32, #tpu.memory_space<vmem>>, vector<16x32xf32>
    %c0_1 = arith.constant 0 : index
    %c0_2 = arith.constant 0 : index
    %c0_3 = arith.constant 0 : index
    %1 = vector.load %arg1[%c0_1, %c0_2, %c0_3] : memref<8x1x8xf32, #tpu.memory_space<vmem>>, vector<8x1x8xf32>
    %c0_4 = arith.constant 0 : index
    %c0_5 = arith.constant 0 : index
    %2 = vector.load %arg2[%c0_4, %c0_5] : memref<32x96xf32, #tpu.memory_space<vmem>>, vector<32x96xf32>
    %cst = arith.constant dense<0.000000e+00> : vector<16x96xf32>
    %3 = tpu.matmul %0, %2, %cst {dimension_numbers = #tpu.dot_dimension_numbers<[1], [0], [0], [1], [0, 0, 1, 1], [], []>} : vector<16x32xf32>, vector<32x96xf32>, vector<16x96xf32> -> vector<16x96xf32>
    %4 = vector.extract_strided_slice %3 {offsets = [0, 0], sizes = [16, 32], strides = [1, 1]} : vector<16x96xf32> to vector<16x32xf32>
    %5 = vector.extract_strided_slice %3 {offsets = [0, 32], sizes = [16, 32], strides = [1, 1]} : vector<16x96xf32> to vector<16x32xf32>
    %6 = vector.extract_strided_slice %3 {offsets = [0, 64], sizes = [16, 32], strides = [1, 1]} : vector<16x96xf32> to vector<16x32xf32>
    %7 = vector.extract_strided_slice %4 {offsets = [0, 0], sizes = [8, 8], strides = [1, 1]} : vector<16x32xf32> to vector<8x8xf32>
    %8 = vector.extract_strided_slice %4 {offsets = [0, 8], sizes = [8, 8], strides = [1, 1]} : vector<16x32xf32> to vector<8x8xf32>
    %9 = vector.extract_strided_slice %4 {offsets = [0, 16], sizes = [8, 8], strides = [1, 1]} : vector<16x32xf32> to vector<8x8xf32>
    %10 = vector.extract_strided_slice %4 {offsets = [0, 24], sizes = [8, 8], strides = [1, 1]} : vector<16x32xf32> to vector<8x8xf32>
    %11 = vector.extract_strided_slice %4 {offsets = [8, 0], sizes = [8, 8], strides = [1, 1]} : vector<16x32xf32> to vector<8x8xf32>
    %12 = vector.extract_strided_slice %4 {offsets = [8, 8], sizes = [8, 8], strides = [1, 1]} : vector<16x32xf32> to vector<8x8xf32>
    %13 = vector.extract_strided_slice %4 {offsets = [8, 16], sizes = [8, 8], strides = [1, 1]} : vector<16x32xf32> to vector<8x8xf32>
    %14 = vector.extract_strided_slice %4 {offsets = [8, 24], sizes = [8, 8], strides = [1, 1]} : vector<16x32xf32> to vector<8x8xf32>
    %15 = vector.shape_cast %7 : vector<8x8xf32> to vector<1x8x8xf32>
    %16 = vector.shape_cast %8 : vector<8x8xf32> to vector<1x8x8xf32>
    %17 = vector.shape_cast %9 : vector<8x8xf32> to vector<1x8x8xf32>
    %18 = vector.shape_cast %10 : vector<8x8xf32> to vector<1x8x8xf32>
    %19 = vector.shape_cast %11 : vector<8x8xf32> to vector<1x8x8xf32>
    %20 = vector.shape_cast %12 : vector<8x8xf32> to vector<1x8x8xf32>
    %21 = vector.shape_cast %13 : vector<8x8xf32> to vector<1x8x8xf32>
    %22 = vector.shape_cast %14 : vector<8x8xf32> to vector<1x8x8xf32>
    %23 = tpu.concatenate %15, %16, %17, %18, %19, %20, %21, %22 in 0 : vector<1x8x8xf32>, vector<1x8x8xf32>, vector<1x8x8xf32>, vector<1x8x8xf32>, vector<1x8x8xf32>, vector<1x8x8xf32>, vector<1x8x8xf32>, vector<1x8x8xf32> -> vector<8x8x8xf32>
    %24 = vector.extract_strided_slice %5 {offsets = [0, 0], sizes = [8, 8], strides = [1, 1]} : vector<16x32xf32> to vector<8x8xf32>
    %25 = vector.extract_strided_slice %5 {offsets = [0, 8], sizes = [8, 8], strides = [1, 1]} : vector<16x32xf32> to vector<8x8xf32>
    %26 = vector.extract_strided_slice %5 {offsets = [0, 16], sizes = [8, 8], strides = [1, 1]} : vector<16x32xf32> to vector<8x8xf32>
    %27 = vector.extract_strided_slice %5 {offsets = [0, 24], sizes = [8, 8], strides = [1, 1]} : vector<16x32xf32> to vector<8x8xf32>
    %28 = vector.extract_strided_slice %5 {offsets = [8, 0], sizes = [8, 8], strides = [1, 1]} : vector<16x32xf32> to vector<8x8xf32>
    %29 = vector.extract_strided_slice %5 {offsets = [8, 8], sizes = [8, 8], strides = [1, 1]} : vector<16x32xf32> to vector<8x8xf32>
    %30 = vector.extract_strided_slice %5 {offsets = [8, 16], sizes = [8, 8], strides = [1, 1]} : vector<16x32xf32> to vector<8x8xf32>
    %31 = vector.extract_strided_slice %5 {offsets = [8, 24], sizes = [8, 8], strides = [1, 1]} : vector<16x32xf32> to vector<8x8xf32>
    %32 = vector.shape_cast %24 : vector<8x8xf32> to vector<1x8x8xf32>
    %33 = vector.shape_cast %25 : vector<8x8xf32> to vector<1x8x8xf32>
    %34 = vector.shape_cast %26 : vector<8x8xf32> to vector<1x8x8xf32>
    %35 = vector.shape_cast %27 : vector<8x8xf32> to vector<1x8x8xf32>
    %36 = vector.shape_cast %28 : vector<8x8xf32> to vector<1x8x8xf32>
    %37 = vector.shape_cast %29 : vector<8x8xf32> to vector<1x8x8xf32>
    %38 = vector.shape_cast %30 : vector<8x8xf32> to vector<1x8x8xf32>
    %39 = vector.shape_cast %31 : vector<8x8xf32> to vector<1x8x8xf32>
    %40 = tpu.concatenate %32, %33, %34, %35, %36, %37, %38, %39 in 0 : vector<1x8x8xf32>, vector<1x8x8xf32>, vector<1x8x8xf32>, vector<1x8x8xf32>, vector<1x8x8xf32>, vector<1x8x8xf32>, vector<1x8x8xf32>, vector<1x8x8xf32> -> vector<8x8x8xf32>
    %41 = vector.extract_strided_slice %6 {offsets = [0, 0], sizes = [8, 8], strides = [1, 1]} : vector<16x32xf32> to vector<8x8xf32>
    %42 = vector.extract_strided_slice %6 {offsets = [0, 8], sizes = [8, 8], strides = [1, 1]} : vector<16x32xf32> to vector<8x8xf32>
    %43 = vector.extract_strided_slice %6 {offsets = [0, 16], sizes = [8, 8], strides = [1, 1]} : vector<16x32xf32> to vector<8x8xf32>
    %44 = vector.extract_strided_slice %6 {offsets = [0, 24], sizes = [8, 8], strides = [1, 1]} : vector<16x32xf32> to vector<8x8xf32>
    %45 = vector.extract_strided_slice %6 {offsets = [8, 0], sizes = [8, 8], strides = [1, 1]} : vector<16x32xf32> to vector<8x8xf32>
    %46 = vector.extract_strided_slice %6 {offsets = [8, 8], sizes = [8, 8], strides = [1, 1]} : vector<16x32xf32> to vector<8x8xf32>
    %47 = vector.extract_strided_slice %6 {offsets = [8, 16], sizes = [8, 8], strides = [1, 1]} : vector<16x32xf32> to vector<8x8xf32>
    %48 = vector.extract_strided_slice %6 {offsets = [8, 24], sizes = [8, 8], strides = [1, 1]} : vector<16x32xf32> to vector<8x8xf32>
    %49 = vector.shape_cast %41 : vector<8x8xf32> to vector<1x8x8xf32>
    %50 = vector.shape_cast %42 : vector<8x8xf32> to vector<1x8x8xf32>
    %51 = vector.shape_cast %43 : vector<8x8xf32> to vector<1x8x8xf32>
    %52 = vector.shape_cast %44 : vector<8x8xf32> to vector<1x8x8xf32>
    %53 = vector.shape_cast %45 : vector<8x8xf32> to vector<1x8x8xf32>
    %54 = vector.shape_cast %46 : vector<8x8xf32> to vector<1x8x8xf32>
    %55 = vector.shape_cast %47 : vector<8x8xf32> to vector<1x8x8xf32>
    %56 = vector.shape_cast %48 : vector<8x8xf32> to vector<1x8x8xf32>
    %57 = tpu.concatenate %49, %50, %51, %52, %53, %54, %55, %56 in 0 : vector<1x8x8xf32>, vector<1x8x8xf32>, vector<1x8x8xf32>, vector<1x8x8xf32>, vector<1x8x8xf32>, vector<1x8x8xf32>, vector<1x8x8xf32>, vector<1x8x8xf32> -> vector<8x8x8xf32>
    "tpu.trace_start"() <{level = 10 : i32, message = "gqd,gkd->gqk"}> : () -> ()
    %cst_6 = arith.constant dense<0.000000e+00> : vector<8x8x8xf32>
    %58 = tpu.matmul %23, %40, %cst_6 {dimension_numbers = #tpu.dot_dimension_numbers<[2], [2], [1], [1], [0, 0, 0, 1, 1, 1], [0], [0]>} : vector<8x8x8xf32>, vector<8x8x8xf32>, vector<8x8x8xf32> -> vector<8x8x8xf32>
    "tpu.trace_stop"() : () -> ()
    %59 = vector.broadcast %1 : vector<8x1x8xf32> to vector<8x8x8xf32>
    %60 = arith.addf %58, %59 : vector<8x8x8xf32>
    %cst_7 = arith.constant dense<0xFF800000> : vector<8x8xf32>
    %61 = vector.multi_reduction <maximumf>, %60, %cst_7 [2] : vector<8x8x8xf32> to vector<8x8xf32>
    %62 = vector.shape_cast %61 : vector<8x8xf32> to vector<8x8x1xf32>
    %63 = vector.broadcast %62 : vector<8x8x1xf32> to vector<8x8x8xf32>
    %64 = arith.subf %60, %63 : vector<8x8x8xf32>
    %65 = math.exp %64 : vector<8x8x8xf32>
    %cst_8 = arith.constant dense<0.000000e+00> : vector<8x8xf32>
    %66 = vector.multi_reduction <add>, %65, %cst_8 [2] : vector<8x8x8xf32> to vector<8x8xf32>
    %67 = vector.shape_cast %66 : vector<8x8xf32> to vector<8x8x1xf32>
    %68 = tpu.reciprocal %67 {approx = true} : vector<8x8x1xf32> -> vector<8x8x1xf32>
    %69 = vector.broadcast %68 : vector<8x8x1xf32> to vector<8x8x8xf32>
    %70 = arith.mulf %65, %69 : vector<8x8x8xf32>
    "tpu.trace_start"() <{level = 10 : i32, message = "gqk,gkd->gqd"}> : () -> ()
    %cst_9 = arith.constant dense<0.000000e+00> : vector<8x8x8xf32>
    %71 = tpu.matmul %70, %57, %cst_9 {dimension_numbers = #tpu.dot_dimension_numbers<[2], [1], [1], [2], [0, 0, 0, 1, 1, 2], [0], [0]>} : vector<8x8x8xf32>, vector<8x8x8xf32>, vector<8x8x8xf32> -> vector<8x8x8xf32>
    "tpu.trace_stop"() : () -> ()
    %72 = vector.extract_strided_slice %71 {offsets = [0, 0, 0], sizes = [1, 8, 8], strides = [1, 1, 1]} : vector<8x8x8xf32> to vector<1x8x8xf32>
    %73 = vector.shape_cast %72 : vector<1x8x8xf32> to vector<8x8xf32>
    %74 = vector.extract_strided_slice %71 {offsets = [1, 0, 0], sizes = [1, 8, 8], strides = [1, 1, 1]} : vector<8x8x8xf32> to vector<1x8x8xf32>
    %75 = vector.shape_cast %74 : vector<1x8x8xf32> to vector<8x8xf32>
    %76 = vector.extract_strided_slice %71 {offsets = [2, 0, 0], sizes = [1, 8, 8], strides = [1, 1, 1]} : vector<8x8x8xf32> to vector<1x8x8xf32>
    %77 = vector.shape_cast %76 : vector<1x8x8xf32> to vector<8x8xf32>
    %78 = vector.extract_strided_slice %71 {offsets = [3, 0, 0], sizes = [1, 8, 8], strides = [1, 1, 1]} : vector<8x8x8xf32> to vector<1x8x8xf32>
    %79 = vector.shape_cast %78 : vector<1x8x8xf32> to vector<8x8xf32>
    %80 = tpu.concatenate %73, %75, %77, %79 in 1 : vector<8x8xf32>, vector<8x8xf32>, vector<8x8xf32>, vector<8x8xf32> -> vector<8x32xf32>
    %81 = vector.extract_strided_slice %71 {offsets = [4, 0, 0], sizes = [1, 8, 8], strides = [1, 1, 1]} : vector<8x8x8xf32> to vector<1x8x8xf32>
    %82 = vector.shape_cast %81 : vector<1x8x8xf32> to vector<8x8xf32>
    %83 = vector.extract_strided_slice %71 {offsets = [5, 0, 0], sizes = [1, 8, 8], strides = [1, 1, 1]} : vector<8x8x8xf32> to vector<1x8x8xf32>
    %84 = vector.shape_cast %83 : vector<1x8x8xf32> to vector<8x8xf32>
    %85 = vector.extract_strided_slice %71 {offsets = [6, 0, 0], sizes = [1, 8, 8], strides = [1, 1, 1]} : vector<8x8x8xf32> to vector<1x8x8xf32>
    %86 = vector.shape_cast %85 : vector<1x8x8xf32> to vector<8x8xf32>
    %87 = vector.extract_strided_slice %71 {offsets = [7, 0, 0], sizes = [1, 8, 8], strides = [1, 1, 1]} : vector<8x8x8xf32> to vector<1x8x8xf32>
    %88 = vector.shape_cast %87 : vector<1x8x8xf32> to vector<8x8xf32>
    %89 = tpu.concatenate %82, %84, %86, %88 in 1 : vector<8x8xf32>, vector<8x8xf32>, vector<8x8xf32>, vector<8x8xf32> -> vector<8x32xf32>
    %90 = tpu.concatenate %80, %89 in 0 : vector<8x32xf32>, vector<8x32xf32> -> vector<16x32xf32>
    %c0_10 = arith.constant 0 : index
    %c0_11 = arith.constant 0 : index
    %91 = vector.load %arg3[%c0_10, %c0_11] : memref<32x32xf32, #tpu.memory_space<vmem>>, vector<32x32xf32>
    %cst_12 = arith.constant dense<0.000000e+00> : vector<16x32xf32>
    %92 = tpu.matmul %90, %91, %cst_12 {dimension_numbers = #tpu.dot_dimension_numbers<[1], [0], [0], [1], [0, 0, 1, 1], [], []>} : vector<16x32xf32>, vector<32x32xf32>, vector<16x32xf32> -> vector<16x32xf32>
    %93 = arith.addf %0, %92 : vector<16x32xf32>
    %c0_13 = arith.constant 0 : index
    %c0_14 = arith.constant 0 : index
    %94 = vector.load %arg8[%c0_13, %c0_14] : memref<1x32xf32, #tpu.memory_space<vmem>>, vector<1x32xf32>
    %c0_15 = arith.constant 0 : index
    %c0_16 = arith.constant 0 : index
    %95 = vector.load %arg9[%c0_15, %c0_16] : memref<1x32xf32, #tpu.memory_space<vmem>>, vector<1x32xf32>
    %cst_17 = arith.constant dense<0.000000e+00> : vector<16xf32>
    %96 = vector.multi_reduction <add>, %93, %cst_17 [1] : vector<16x32xf32> to vector<16xf32>
    %97 = vector.shape_cast %96 : vector<16xf32> to vector<16x1xf32>
    %cst_18 = arith.constant 3.200000e+01 : f32
    %98 = vector.broadcast %cst_18 : f32 to vector<16x1xf32>
    %99 = arith.divf %97, %98 : vector<16x1xf32>
    %100 = vector.broadcast %99 : vector<16x1xf32> to vector<16x32xf32>
    %101 = arith.subf %93, %100 : vector<16x32xf32>
    %102 = arith.mulf %101, %101 : vector<16x32xf32>
    %cst_19 = arith.constant dense<0.000000e+00> : vector<16xf32>
    %103 = vector.multi_reduction <add>, %102, %cst_19 [1] : vector<16x32xf32> to vector<16xf32>
    %104 = vector.shape_cast %103 : vector<16xf32> to vector<16x1xf32>
    %cst_20 = arith.constant 3.200000e+01 : f32
    %105 = vector.broadcast %cst_20 : f32 to vector<16x1xf32>
    %106 = arith.divf %104, %105 : vector<16x1xf32>
    %107 = vector.broadcast %99 : vector<16x1xf32> to vector<16x32xf32>
    %108 = arith.subf %93, %107 : vector<16x32xf32>
    %cst_21 = arith.constant 9.99999974E-6 : f32
    %109 = vector.broadcast %cst_21 : f32 to vector<16x1xf32>
    %110 = arith.addf %106, %109 : vector<16x1xf32>
    %111 = math.rsqrt %110 : vector<16x1xf32>
    %112 = vector.broadcast %111 : vector<16x1xf32> to vector<16x32xf32>
    %113 = arith.mulf %108, %112 : vector<16x32xf32>
    %114 = vector.broadcast %94 : vector<1x32xf32> to vector<16x32xf32>
    %115 = arith.mulf %113, %114 : vector<16x32xf32>
    %116 = vector.broadcast %95 : vector<1x32xf32> to vector<16x32xf32>
    %117 = arith.addf %115, %116 : vector<16x32xf32>
    %c0_22 = arith.constant 0 : index
    %c0_23 = arith.constant 0 : index
    %118 = vector.load %arg4[%c0_22, %c0_23] : memref<32x64xf32, #tpu.memory_space<vmem>>, vector<32x64xf32>
    %cst_24 = arith.constant dense<0.000000e+00> : vector<16x64xf32>
    %119 = tpu.matmul %117, %118, %cst_24 {dimension_numbers = #tpu.dot_dimension_numbers<[1], [0], [0], [1], [0, 0, 1, 1], [], []>} : vector<16x32xf32>, vector<32x64xf32>, vector<16x64xf32> -> vector<16x64xf32>
    %c0_25 = arith.constant 0 : index
    %c0_26 = arith.constant 0 : index
    %120 = vector.load %arg5[%c0_25, %c0_26] : memref<1x64xf32, #tpu.memory_space<vmem>>, vector<1x64xf32>
    %121 = vector.broadcast %120 : vector<1x64xf32> to vector<16x64xf32>
    %122 = arith.addf %119, %121 : vector<16x64xf32>
    %cst_27 = arith.constant 0.000000e+00 : f32
    %123 = vector.broadcast %cst_27 : f32 to vector<16x64xf32>
    %124 = arith.maximumf %122, %123 : vector<16x64xf32>
    %c0_28 = arith.constant 0 : index
    %c0_29 = arith.constant 0 : index
    %125 = vector.load %arg6[%c0_28, %c0_29] : memref<64x32xf32, #tpu.memory_space<vmem>>, vector<64x32xf32>
    %cst_30 = arith.constant dense<0.000000e+00> : vector<16x32xf32>
    %126 = tpu.matmul %124, %125, %cst_30 {dimension_numbers = #tpu.dot_dimension_numbers<[1], [0], [0], [1], [0, 0, 1, 1], [], []>} : vector<16x64xf32>, vector<64x32xf32>, vector<16x32xf32> -> vector<16x32xf32>
    %c0_31 = arith.constant 0 : index
    %c0_32 = arith.constant 0 : index
    %127 = vector.load %arg7[%c0_31, %c0_32] : memref<1x32xf32, #tpu.memory_space<vmem>>, vector<1x32xf32>
    %128 = vector.broadcast %127 : vector<1x32xf32> to vector<16x32xf32>
    %129 = arith.addf %126, %128 : vector<16x32xf32>
    %130 = arith.addf %117, %129 : vector<16x32xf32>
    %c0_33 = arith.constant 0 : index
    %c0_34 = arith.constant 0 : index
    %131 = vector.load %arg10[%c0_33, %c0_34] : memref<1x32xf32, #tpu.memory_space<vmem>>, vector<1x32xf32>
    %c0_35 = arith.constant 0 : index
    %c0_36 = arith.constant 0 : index
    %132 = vector.load %arg11[%c0_35, %c0_36] : memref<1x32xf32, #tpu.memory_space<vmem>>, vector<1x32xf32>
    %cst_37 = arith.constant dense<0.000000e+00> : vector<16xf32>
    %133 = vector.multi_reduction <add>, %130, %cst_37 [1] : vector<16x32xf32> to vector<16xf32>
    %134 = vector.shape_cast %133 : vector<16xf32> to vector<16x1xf32>
    %cst_38 = arith.constant 3.200000e+01 : f32
    %135 = vector.broadcast %cst_38 : f32 to vector<16x1xf32>
    %136 = arith.divf %134, %135 : vector<16x1xf32>
    %137 = vector.broadcast %136 : vector<16x1xf32> to vector<16x32xf32>
    %138 = arith.subf %130, %137 : vector<16x32xf32>
    %139 = arith.mulf %138, %138 : vector<16x32xf32>
    %cst_39 = arith.constant dense<0.000000e+00> : vector<16xf32>
    %140 = vector.multi_reduction <add>, %139, %cst_39 [1] : vector<16x32xf32> to vector<16xf32>
    %141 = vector.shape_cast %140 : vector<16xf32> to vector<16x1xf32>
    %cst_40 = arith.constant 3.200000e+01 : f32
    %142 = vector.broadcast %cst_40 : f32 to vector<16x1xf32>
    %143 = arith.divf %141, %142 : vector<16x1xf32>
    %144 = vector.broadcast %136 : vector<16x1xf32> to vector<16x32xf32>
    %145 = arith.subf %130, %144 : vector<16x32xf32>
    %cst_41 = arith.constant 9.99999974E-6 : f32
    %146 = vector.broadcast %cst_41 : f32 to vector<16x1xf32>
    %147 = arith.addf %143, %146 : vector<16x1xf32>
    %148 = math.rsqrt %147 : vector<16x1xf32>
    %149 = vector.broadcast %148 : vector<16x1xf32> to vector<16x32xf32>
    %150 = arith.mulf %145, %149 : vector<16x32xf32>
    %151 = vector.broadcast %131 : vector<1x32xf32> to vector<16x32xf32>
    %152 = arith.mulf %150, %151 : vector<16x32xf32>
    %153 = vector.broadcast %132 : vector<1x32xf32> to vector<16x32xf32>
    %154 = arith.addf %152, %153 : vector<16x32xf32>
    %c0_42 = arith.constant 0 : index
    %c0_43 = arith.constant 0 : index
    %155 = vector.load %arg12[%c0_42, %c0_43] : memref<16x32xf32, #tpu.memory_space<vmem>>, vector<16x32xf32>
    tpu.vector_store %arg12[%c0_42, %c0_43], %154 {strides = array<i32>} : memref<16x32xf32, #tpu.memory_space<vmem>>, vector<16x32xf32>,
    return
  }
}

</mosaic_0001>

<llo_original>
// kernel: encoder_layer.1
$region0: #{encoder_layer.1}
  #allocation0 [shape = 'u32[]', space=smem, size = 0x4, offset = 0x4, fixed_abs, tag = 'smem constant byte address 0x4 - core index']
  #allocation1 [shape = 'u32[144,128]{1,0:T(1,128)}', space=vmem, size = 0x12000, scoped, tag = 'internal scratch']
  %s0 = inlined_call_operand.vmem [shape: f32[16,32], index: 0, kind: input, shape index: {}]
  %s1 = inlined_call_operand.vmem [shape: f32[8,1,8], index: 1, kind: input, shape index: {}]
  %s2 = inlined_call_operand.vmem [shape: f32[32,96], index: 2, kind: input, shape index: {}]
  %s3 = inlined_call_operand.vmem [shape: f32[32,32], index: 3, kind: input, shape index: {}]
  %s4 = inlined_call_operand.vmem [shape: f32[32,64], index: 4, kind: input, shape index: {}]
  %s5 = inlined_call_operand.vmem [shape: f32[1,64], index: 5, kind: input, shape index: {}]
  %s6 = inlined_call_operand.vmem [shape: f32[64,32], index: 6, kind: input, shape index: {}]
  %s7 = inlined_call_operand.vmem [shape: f32[1,32], index: 7, kind: input, shape index: {}]
  %s8 = inlined_call_operand.vmem [shape: f32[1,32], index: 8, kind: input, shape index: {}]
  %s9 = inlined_call_operand.vmem [shape: f32[1,32], index: 9, kind: input, shape index: {}]
  %s10 = inlined_call_operand.vmem [shape: f32[1,32], index: 10, kind: input, shape index: {}]
  %s11 = inlined_call_operand.vmem [shape: f32[1,32], index: 11, kind: input, shape index: {}]
  %s12 = inlined_call_operand.hbm [shape: f32[16,32], index: 12, kind: output, shape index: {}]
  %s13 = sld [smem:[#allocation0]]
  $region58: #{encoder_layer.1} parent=0
    _
  %s15 = ssub.s32 1, %s13
  %s16 = scalar_select 0, %s15, %s13
  $region1: #{encoder_layer.1} parent=0
    #allocation2 [shape = 'u8[8192]{0}', space=vmem, size = 0x2000, scoped, tag = 'output window, operand 0, single buffered']
    #allocation3 [shape = 's32[1]{0}', space=sflag, size = 0x4, scoped, tag = 'scoped memory for encoder_layer.1']
    %17 = vsyncpa [#allocation3], 0
    // Predicated region
    $region2: #{encoder_layer.1} parent=1 // pred_check
      _
    $region3: #{encoder_layer.1} parent=1 // pred_check_branch
      %19 = sbr.rel (0) target = $region5
    $region4: #{encoder_layer.1} parent=1 // pred_region
      _
    $region5: #{encoder_layer.1} parent=1 // pred_fallthru
      _
    // Predicated region
    $region6: #{encoder_layer.1} parent=1 // pred_check
      _
    $region7: #{encoder_layer.1} parent=1 // pred_check_branch
      %21 = sbr.rel (0) target = $region9
    $region8: #{encoder_layer.1} parent=1 // pred_region
      _
    $region9: #{encoder_layer.1} parent=1 // pred_fallthru
      _
    // Predicated region
    $region10: #{encoder_layer.1} parent=1 // pred_check
      _
    $region11: #{encoder_layer.1} parent=1 // pred_check_branch
      %23 = sbr.rel (0) target = $region13
    $region12: #{encoder_layer.1} parent=1 // pred_region
      _
    $region13: #{encoder_layer.1} parent=1 // pred_fallthru
      _
    // Predicated region
    $region14: #{encoder_layer.1} parent=1 // pred_check
      _
    $region15: #{encoder_layer.1} parent=1 // pred_check_branch
      %25 = sbr.rel (0) target = $region17
    $region16: #{encoder_layer.1} parent=1 // pred_region
      _
    $region17: #{encoder_layer.1} parent=1 // pred_fallthru
      _
    // Predicated region
    $region18: #{encoder_layer.1} parent=1 // pred_check
      _
    $region19: #{encoder_layer.1} parent=1 // pred_check_branch
      %27 = sbr.rel (0) target = $region21
    $region20: #{encoder_layer.1} parent=1 // pred_region
      _
    $region21: #{encoder_layer.1} parent=1 // pred_fallthru
      _
    // Predicated region
    $region22: #{encoder_layer.1} parent=1 // pred_check
      _
    $region23: #{encoder_layer.1} parent=1 // pred_check_branch
      %29 = sbr.rel (0) target = $region25
    $region24: #{encoder_layer.1} parent=1 // pred_region
      _
    $region25: #{encoder_layer.1} parent=1 // pred_fallthru
      _
    // Predicated region
    $region26: #{encoder_layer.1} parent=1 // pred_check
      _
    $region27: #{encoder_layer.1} parent=1 // pred_check_branch
      %31 = sbr.rel (0) target = $region29
    $region28: #{encoder_layer.1} parent=1 // pred_region
      _
    $region29: #{encoder_layer.1} parent=1 // pred_fallthru
      _
    // Predicated region
    $region30: #{encoder_layer.1} parent=1 // pred_check
      _
    $region31: #{encoder_layer.1} parent=1 // pred_check_branch
      %33 = sbr.rel (0) target = $region33
    $region32: #{encoder_layer.1} parent=1 // pred_region
      _
    $region33: #{encoder_layer.1} parent=1 // pred_fallthru
      _
    // Predicated region
    $region34: #{encoder_layer.1} parent=1 // pred_check
      _
    $region35: #{encoder_layer.1} parent=1 // pred_check_branch
      %35 = sbr.rel (0) target = $region37
    $region36: #{encoder_layer.1} parent=1 // pred_region
      _
    $region37: #{encoder_layer.1} parent=1 // pred_fallthru
      _
    // Predicated region
    $region38: #{encoder_layer.1} parent=1 // pred_check
      _
    $region39: #{encoder_layer.1} parent=1 // pred_check_branch
      %37 = sbr.rel (0) target = $region41
    $region40: #{encoder_layer.1} parent=1 // pred_region
      _
    $region41: #{encoder_layer.1} parent=1 // pred_fallthru
      _
    // Predicated region
    $region42: #{encoder_layer.1} parent=1 // pred_check
      _
    $region43: #{encoder_layer.1} parent=1 // pred_check_branch
      %39 = sbr.rel (0) target = $region45
    $region44: #{encoder_layer.1} parent=1 // pred_region
      _
    $region45: #{encoder_layer.1} parent=1 // pred_fallthru
      _
    // Predicated region
    $region46: #{encoder_layer.1} parent=1 // pred_check
      _
    $region47: #{encoder_layer.1} parent=1 // pred_check_branch
      %41 = sbr.rel (0) target = $region49
    $region48: #{encoder_layer.1} parent=1 // pred_region
      _
    $region49: #{encoder_layer.1} parent=1 // pred_fallthru
      _
    %v42 = vld [vmem:[%s0] sm:$0xff]
    %v43 = vld [vmem:[%s0 + $0x8] sm:$0xff]
    %v44 = vld [vmem:[%s1] sm:$0x1]
    %v45 = vld [vmem:[%s1 + $0x1] sm:$0x1]
    %v46 = vld [vmem:[%s1 + $0x2] sm:$0x1]
    %v47 = vld [vmem:[%s1 + $0x3] sm:$0x1]
    %v48 = vld [vmem:[%s1 + $0x4] sm:$0x1]
    %v49 = vld [vmem:[%s1 + $0x5] sm:$0x1]
    %v50 = vld [vmem:[%s1 + $0x6] sm:$0x1]
    %v51 = vld [vmem:[%s1 + $0x7] sm:$0x1]
    %v52 = vld [vmem:[%s2] sm:$0xff]
    %v53 = vld [vmem:[%s2 + $0x8] sm:$0xff]
    %v54 = vld [vmem:[%s2 + $0x10] sm:$0xff]
    %v55 = vld [vmem:[%s2 + $0x18] sm:$0xff]
    %vm56 = vcmask 261120
    %v58 = vsel %vm56, %v42, 0
    %v61 = vsel %vm56, %v43, 0
    %63 = vmatprep.subr.mxu0 0.0
    %64 = vmatpush1.msra.mxu0 %v52
    %65 = vmatprep.subr.mxu0 0.0
    %66 = vmatpush1.msra.mxu0 %v53
    %67 = vmatprep.subr.mxu0 0.0
    %68 = vmatpush1.msra.mxu0 %v54
    %69 = vmatprep.subr.mxu0 0.0
    %70 = vmatpush1.msra.mxu0 %v55
    %71 = vmatprep.subr.mxu0 0.0
    %72 = vmatpush1.msra.mxu0 0.0
    %73 = vmatprep.subr.mxu0 0.0
    %74 = vmatpush1.msra.mxu0 0.0
    %75 = vmatprep.subr.mxu0 0.0
    %76 = vmatpush1.msra.mxu0 0.0
    %77 = vmatprep.subr.mxu0 0.0
    %78 = vmatpush1.msra.mxu0 0.0
    %79 = vmatprep.subr.mxu0 0.0
    %80 = vmatpush1.msra.mxu0 0.0
    %81 = vmatprep.subr.mxu0 0.0
    %82 = vmatpush1.msra.mxu0 0.0
    %83 = vmatprep.subr.mxu0 0.0
    %84 = vmatpush1.msra.mxu0 0.0
    %85 = vmatprep.subr.mxu0 0.0
    %86 = vmatpush1.msra.mxu0 0.0
    %87 = vmatprep.subr.mxu0 0.0
    %88 = vmatpush1.msra.mxu0 0.0
    %89 = vmatprep.subr.mxu0 0.0
    %90 = vmatpush1.msra.mxu0 0.0
    %91 = vmatprep.subr.mxu0 0.0
    %92 = vmatpush1.msra.mxu0 0.0
    %93 = vmatprep.subr.mxu0 0.0
    %94 = vmatpush1.msra.mxu0 0.0
    %95 = vmatprep.subr.mxu0 0.0
    %96 = vmatpush1.msra.mxu0 0.0
    %97 = vmatprep.subr.mxu0 0.0
    %98 = vmatpush1.msra.mxu0 0.0
    %99 = vmatprep.subr.mxu0 0.0
    %100 = vmatpush1.msra.mxu0 0.0
    %101 = vmatprep.subr.mxu0 0.0
    %102 = vmatpush1.msra.mxu0 0.0
    %103 = vmatprep.subr.mxu0 0.0
    %104 = vmatpush1.msra.mxu0 0.0
    %105 = vmatprep.subr.mxu0 0.0
    %106 = vmatpush1.msra.mxu0 0.0
    %107 = vmatprep.subr.mxu0 0.0
    %108 = vmatpush1.msra.mxu0 0.0
    %109 = vmatprep.subr.mxu0 0.0
    %110 = vmatpush1.msra.mxu0 0.0
    %111 = vmatprep.subr.mxu0 0.0
    %112 = vmatpush1.msra.mxu0 0.0
    %113 = vmatprep.subr.mxu0 0.0
    %114 = vmatpush1.msra.mxu0 0.0
    %115 = vmatprep.subr.mxu0 0.0
    %116 = vmatpush1.msra.mxu0 0.0
    %117 = vmatprep.subr.mxu0 0.0
    %118 = vmatpush1.msra.mxu0 0.0
    %119 = vmatprep.subr.mxu0 0.0
    %120 = vmatpush1.msra.mxu0 0.0
    %121 = vmatprep.subr.mxu0 0.0
    %122 = vmatpush1.msra.mxu0 0.0
    %123 = vmatprep.subr.mxu0 0.0
    %124 = vmatpush1.msra.mxu0 0.0
    %125 = vmatprep.subr.mxu0 0.0
    %126 = vmatpush1.msra.mxu0 0.0
    %127 = vmatprep.mubr.f32.mxu0 0.0
    %128 = vmatmul.mubr.f32.gmra.mrb[0].mxu0 %v58
    %v129 = vpop.f32.mrb[0].mxu0
    %v130 = vadd.f32 0.0, %v129
    %v131 = vpop.f32.mrb[0].mxu0
    %132 = vmatprep.mubr.f32.mxu0 0.0
    %133 = vmatmul.mubr.f32.gmra.mrb[0].mxu0 %v61
    %v134 = vpop.f32.mrb[0].mxu0
    %v135 = vadd.f32 0.0, %v134
    %v136 = vpop.f32.mrb[0].mxu0
    %137 = vdwg.mxu0
    %139 = vrot.lane.b32.xlu0 %v130, 120
    %v140 = vpop.permute.xlu0 %139
    %141 = vrot.lane.b32.xlu0 %v130, 112
    %v142 = vpop.permute.xlu0 %141
    %143 = vrot.lane.b32.xlu0 %v130, 104
    %v144 = vpop.permute.xlu0 %143
    %146 = vrot.lane.b32.xlu0 %v135, 120
    %v147 = vpop.permute.xlu0 %146
    %148 = vrot.lane.b32.xlu0 %v135, 112
    %v149 = vpop.permute.xlu0 %148
    %150 = vrot.lane.b32.xlu0 %v135, 104
    %v151 = vpop.permute.xlu0 %150
    %v160 = vlaneseq
    %v161 = vshrl.u32 %v160, 7
    %v162 = vsub.s32 0, %v161
    %v163 = vrot.slane %v44, %v162
    %v164 = vlaneseq
    %v165 = vshrl.u32 %v164, 7
    %v166 = vsub.s32 0, %v165
    %v167 = vrot.slane %v45, %v166
    %v168 = vlaneseq
    %v169 = vshrl.u32 %v168, 7
    %v170 = vsub.s32 0, %v169
    %v171 = vrot.slane %v46, %v170
    %v172 = vlaneseq
    %v173 = vshrl.u32 %v172, 7
    %v174 = vsub.s32 0, %v173
    %v175 = vrot.slane %v47, %v174
    %v176 = vlaneseq
    %v177 = vshrl.u32 %v176, 7
    %v178 = vsub.s32 0, %v177
    %v179 = vrot.slane %v48, %v178
    %v180 = vlaneseq
    %v181 = vshrl.u32 %v180, 7
    %v182 = vsub.s32 0, %v181
    %v183 = vrot.slane %v49, %v182
    %v184 = vlaneseq
    %v185 = vshrl.u32 %v184, 7
    %v186 = vsub.s32 0, %v185
    %v187 = vrot.slane %v50, %v186
    %v188 = vlaneseq
    %v189 = vshrl.u32 %v188, 7
    %v190 = vsub.s32 0, %v189
    %v191 = vrot.slane %v51, %v190
    %200 = vrot.lane.b32.xlu0 %v130, 96
    %v201 = vpop.permute.xlu0 %200
    %vm202 = vcmask 64512
    %v203 = vsel %vm202, %v130, 0
    %v205 = vsel %vm202, %v201, 0
    %207 = vmatprep.subr.mxu0 0.0
    %208 = vmatpush1.xpose.msra.mxu0 %v205
    %209 = vmatprep.subr.mxu0 0.0
    %210 = vmatpush1.xpose.msra.mxu0 0.0
    %211 = vmatprep.subr.mxu0 0.0
    %212 = vmatpush1.xpose.msra.mxu0 0.0
    %213 = vmatprep.subr.mxu0 0.0
    %214 = vmatpush1.xpose.msra.mxu0 0.0
    %215 = vmatprep.subr.mxu0 0.0
    %216 = vmatpush1.xpose.msra.mxu0 0.0
    %217 = vmatprep.subr.mxu0 0.0
    %218 = vmatpush1.xpose.msra.mxu0 0.0
    %219 = vmatprep.subr.mxu0 0.0
    %220 = vmatpush1.xpose.msra.mxu0 0.0
    %221 = vmatprep.subr.mxu0 0.0
    %222 = vmatpush1.xpose.msra.mxu0 0.0
    %223 = vmatprep.subr.mxu0 0.0
    %224 = vmatpush1.xpose.msra.mxu0 0.0
    %225 = vmatprep.subr.mxu0 0.0
    %226 = vmatpush1.xpose.msra.mxu0 0.0
    %227 = vmatprep.subr.mxu0 0.0
    %228 = vmatpush1.xpose.msra.mxu0 0.0
    %229 = vmatprep.subr.mxu0 0.0
    %230 = vmatpush1.xpose.msra.mxu0 0.0
    %231 = vmatprep.subr.mxu0 0.0
    %232 = vmatpush1.xpose.msra.mxu0 0.0
    %233 = vmatprep.subr.mxu0 0.0
    %234 = vmatpush1.xpose.msra.mxu0 0.0
    %235 = vmatprep.subr.mxu0 0.0
    %236 = vmatpush1.xpose.msra.mxu0 0.0
    %237 = vmatprep.subr.mxu0 0.0
    %238 = vmatpush1.xpose.msra.mxu0 0.0
    %239 = vmatprep.subr.mxu0 0.0
    %240 = vmatpush1.xpose.msra.mxu0 0.0
    %241 = vmatprep.subr.mxu0 0.0
    %242 = vmatpush1.xpose.msra.mxu0 0.0
    %243 = vmatprep.subr.mxu0 0.0
    %244 = vmatpush1.xpose.msra.mxu0 0.0
    %245 = vmatprep.subr.mxu0 0.0
    %246 = vmatpush1.xpose.msra.mxu0 0.0
    %247 = vmatprep.subr.mxu0 0.0
    %248 = vmatpush1.xpose.msra.mxu0 0.0
    %249 = vmatprep.subr.mxu0 0.0
    %250 = vmatpush1.xpose.msra.mxu0 0.0
    %251 = vmatprep.subr.mxu0 0.0
    %252 = vmatpush1.xpose.msra.mxu0 0.0
    %253 = vmatprep.subr.mxu0 0.0
    %254 = vmatpush1.xpose.msra.mxu0 0.0
    %255 = vmatprep.subr.mxu0 0.0
    %256 = vmatpush1.xpose.msra.mxu0 0.0
    %257 = vmatprep.subr.mxu0 0.0
    %258 = vmatpush1.xpose.msra.mxu0 0.0
    %259 = vmatprep.subr.mxu0 0.0
    %260 = vmatpush1.xpose.msra.mxu0 0.0
    %261 = vmatprep.subr.mxu0 0.0
    %262 = vmatpush1.xpose.msra.mxu0 0.0
    %263 = vmatprep.subr.mxu0 0.0
    %264 = vmatpush1.xpose.msra.mxu0 0.0
    %265 = vmatprep.subr.mxu0 0.0
    %266 = vmatpush1.xpose.msra.mxu0 0.0
    %267 = vmatprep.subr.mxu0 0.0
    %268 = vmatpush1.xpose.msra.mxu0 0.0
    %269 = vmatprep.subr.mxu0 0.0
    %270 = vmatpush1.xpose.msra.mxu0 0.0
    %271 = vmatprep.mubr.f32.mxu0 0.0
    %272 = vmatmul.mubr.f32.gmra.mrb[0].mxu0 %v203
    %v273 = vpop.f32.mrb[0].mxu0
    %v274 = vadd.f32 %v163, %v273
    %v275 = vpop.f32.mrb[0].mxu0
    %276 = vdwg.mxu0
    %277 = vrot.lane.b32.xlu0 %v140, 96
    %v278 = vpop.permute.xlu0 %277
    %v279 = vsel %vm202, %v140, 0
    %v281 = vsel %vm202, %v278, 0
    %283 = vmatprep.subr.mxu0 0.0
    %284 = vmatpush1.xpose.msra.mxu0 %v281
    %285 = vmatprep.subr.mxu0 0.0
    %286 = vmatpush1.xpose.msra.mxu0 0.0
    %287 = vmatprep.subr.mxu0 0.0
    %288 = vmatpush1.xpose.msra.mxu0 0.0
    %289 = vmatprep.subr.mxu0 0.0
    %290 = vmatpush1.xpose.msra.mxu0 0.0
    %291 = vmatprep.subr.mxu0 0.0
    %292 = vmatpush1.xpose.msra.mxu0 0.0
    %293 = vmatprep.subr.mxu0 0.0
    %294 = vmatpush1.xpose.msra.mxu0 0.0
    %295 = vmatprep.subr.mxu0 0.0
    %296 = vmatpush1.xpose.msra.mxu0 0.0
    %297 = vmatprep.subr.mxu0 0.0
    %298 = vmatpush1.xpose.msra.mxu0 0.0
    %299 = vmatprep.subr.mxu0 0.0
    %300 = vmatpush1.xpose.msra.mxu0 0.0
    %301 = vmatprep.subr.mxu0 0.0
    %302 = vmatpush1.xpose.msra.mxu0 0.0
    %303 = vmatprep.subr.mxu0 0.0
    %304 = vmatpush1.xpose.msra.mxu0 0.0
    %305 = vmatprep.subr.mxu0 0.0
    %306 = vmatpush1.xpose.msra.mxu0 0.0
    %307 = vmatprep.subr.mxu0 0.0
    %308 = vmatpush1.xpose.msra.mxu0 0.0
    %309 = vmatprep.subr.mxu0 0.0
    %310 = vmatpush1.xpose.msra.mxu0 0.0
    %311 = vmatprep.subr.mxu0 0.0
    %312 = vmatpush1.xpose.msra.mxu0 0.0
    %313 = vmatprep.subr.mxu0 0.0
    %314 = vmatpush1.xpose.msra.mxu0 0.0
    %315 = vmatprep.subr.mxu0 0.0
    %316 = vmatpush1.xpose.msra.mxu0 0.0
    %317 = vmatprep.subr.mxu0 0.0
    %318 = vmatpush1.xpose.msra.mxu0 0.0
    %319 = vmatprep.subr.mxu0 0.0
    %320 = vmatpush1.xpose.msra.mxu0 0.0
    %321 = vmatprep.subr.mxu0 0.0
    %322 = vmatpush1.xpose.msra.mxu0 0.0
    %323 = vmatprep.subr.mxu0 0.0
    %324 = vmatpush1.xpose.msra.mxu0 0.0
    %325 = vmatprep.subr.mxu0 0.0
    %326 = vmatpush1.xpose.msra.mxu0 0.0
    %327 = vmatprep.subr.mxu0 0.0
    %328 = vmatpush1.xpose.msra.mxu0 0.0
    %329 = vmatprep.subr.mxu0 0.0
    %330 = vmatpush1.xpose.msra.mxu0 0.0
    %331 = vmatprep.subr.mxu0 0.0
    %332 = vmatpush1.xpose.msra.mxu0 0.0
    %333 = vmatprep.subr.mxu0 0.0
    %334 = vmatpush1.xpose.msra.mxu0 0.0
    %335 = vmatprep.subr.mxu0 0.0
    %336 = vmatpush1.xpose.msra.mxu0 0.0
    %337 = vmatprep.subr.mxu0 0.0
    %338 = vmatpush1.xpose.msra.mxu0 0.0
    %339 = vmatprep.subr.mxu0 0.0
    %340 = vmatpush1.xpose.msra.mxu0 0.0
    %341 = vmatprep.subr.mxu0 0.0
    %342 = vmatpush1.xpose.msra.mxu0 0.0
    %343 = vmatprep.subr.mxu0 0.0
    %344 = vmatpush1.xpose.msra.mxu0 0.0
    %345 = vmatprep.subr.mxu0 0.0
    %346 = vmatpush1.xpose.msra.mxu0 0.0
    %347 = vmatprep.mubr.f32.mxu0 0.0
    %348 = vmatmul.mubr.f32.gmra.mrb[0].mxu0 %v279
    %v349 = vpop.f32.mrb[0].mxu0
    %v350 = vadd.f32 %v167, %v349
    %v351 = vpop.f32.mrb[0].mxu0
    %352 = vdwg.mxu0
    %353 = vrot.lane.b32.xlu0 %v142, 96
    %v354 = vpop.permute.xlu0 %353
    %v355 = vsel %vm202, %v142, 0
    %v357 = vsel %vm202, %v354, 0
    %359 = vmatprep.subr.mxu0 0.0
    %360 = vmatpush1.xpose.msra.mxu0 %v357
    %361 = vmatprep.subr.mxu0 0.0
    %362 = vmatpush1.xpose.msra.mxu0 0.0
    %363 = vmatprep.subr.mxu0 0.0
    %364 = vmatpush1.xpose.msra.mxu0 0.0
    %365 = vmatprep.subr.mxu0 0.0
    %366 = vmatpush1.xpose.msra.mxu0 0.0
    %367 = vmatprep.subr.mxu0 0.0
    %368 = vmatpush1.xpose.msra.mxu0 0.0
    %369 = vmatprep.subr.mxu0 0.0
    %370 = vmatpush1.xpose.msra.mxu0 0.0
    %371 = vmatprep.subr.mxu0 0.0
    %372 = vmatpush1.xpose.msra.mxu0 0.0
    %373 = vmatprep.subr.mxu0 0.0
    %374 = vmatpush1.xpose.msra.mxu0 0.0
    %375 = vmatprep.subr.mxu0 0.0
    %376 = vmatpush1.xpose.msra.mxu0 0.0
    %377 = vmatprep.subr.mxu0 0.0
    %378 = vmatpush1.xpose.msra.mxu0 0.0
    %379 = vmatprep.subr.mxu0 0.0
    %380 = vmatpush1.xpose.msra.mxu0 0.0
    %381 = vmatprep.subr.mxu0 0.0
    %382 = vmatpush1.xpose.msra.mxu0 0.0
    %383 = vmatprep.subr.mxu0 0.0
    %384 = vmatpush1.xpose.msra.mxu0 0.0
    %385 = vmatprep.subr.mxu0 0.0
    %386 = vmatpush1.xpose.msra.mxu0 0.0
    %387 = vmatprep.subr.mxu0 0.0
    %388 = vmatpush1.xpose.msra.mxu0 0.0
    %389 = vmatprep.subr.mxu0 0.0
    %390 = vmatpush1.xpose.msra.mxu0 0.0
    %391 = vmatprep.subr.mxu0 0.0
    %392 = vmatpush1.xpose.msra.mxu0 0.0
    %393 = vmatprep.subr.mxu0 0.0
    %394 = vmatpush1.xpose.msra.mxu0 0.0
    %395 = vmatprep.subr.mxu0 0.0
    %396 = vmatpush1.xpose.msra.mxu0 0.0
    %397 = vmatprep.subr.mxu0 0.0
    %398 = vmatpush1.xpose.msra.mxu0 0.0
    %399 = vmatprep.subr.mxu0 0.0
    %400 = vmatpush1.xpose.msra.mxu0 0.0
    %401 = vmatprep.subr.mxu0 0.0
    %402 = vmatpush1.xpose.msra.mxu0 0.0
    %403 = vmatprep.subr.mxu0 0.0
    %404 = vmatpush1.xpose.msra.mxu0 0.0
    %405 = vmatprep.subr.mxu0 0.0
    %406 = vmatpush1.xpose.msra.mxu0 0.0
    %407 = vmatprep.subr.mxu0 0.0
    %408 = vmatpush1.xpose.msra.mxu0 0.0
    %409 = vmatprep.subr.mxu0 0.0
    %410 = vmatpush1.xpose.msra.mxu0 0.0
    %411 = vmatprep.subr.mxu0 0.0
    %412 = vmatpush1.xpose.msra.mxu0 0.0
    %413 = vmatprep.subr.mxu0 0.0
    %414 = vmatpush1.xpose.msra.mxu0 0.0
    %415 = vmatprep.subr.mxu0 0.0
    %416 = vmatpush1.xpose.msra.mxu0 0.0
    %417 = vmatprep.subr.mxu0 0.0
    %418 = vmatpush1.xpose.msra.mxu0 0.0
    %419 = vmatprep.subr.mxu0 0.0
    %420 = vmatpush1.xpose.msra.mxu0 0.0
    %421 = vmatprep.subr.mxu0 0.0
    %422 = vmatpush1.xpose.msra.mxu0 0.0
    %423 = vmatprep.mubr.f32.mxu0 0.0
    %424 = vmatmul.mubr.f32.gmra.mrb[0].mxu0 %v355
    %v425 = vpop.f32.mrb[0].mxu0
    %v426 = vadd.f32 %v171, %v425
    %v427 = vpop.f32.mrb[0].mxu0
    %428 = vdwg.mxu0
    %429 = vrot.lane.b32.xlu0 %v144, 96
    %v430 = vpop.permute.xlu0 %429
    %v431 = vsel %vm202, %v144, 0
    %v433 = vsel %vm202, %v430, 0
    %435 = vmatprep.subr.mxu0 0.0
    %436 = vmatpush1.xpose.msra.mxu0 %v433
    %437 = vmatprep.subr.mxu0 0.0
    %438 = vmatpush1.xpose.msra.mxu0 0.0
    %439 = vmatprep.subr.mxu0 0.0
    %440 = vmatpush1.xpose.msra.mxu0 0.0
    %441 = vmatprep.subr.mxu0 0.0
    %442 = vmatpush1.xpose.msra.mxu0 0.0
    %443 = vmatprep.subr.mxu0 0.0
    %444 = vmatpush1.xpose.msra.mxu0 0.0
    %445 = vmatprep.subr.mxu0 0.0
    %446 = vmatpush1.xpose.msra.mxu0 0.0
    %447 = vmatprep.subr.mxu0 0.0
    %448 = vmatpush1.xpose.msra.mxu0 0.0
    %449 = vmatprep.subr.mxu0 0.0
    %450 = vmatpush1.xpose.msra.mxu0 0.0
    %451 = vmatprep.subr.mxu0 0.0
    %452 = vmatpush1.xpose.msra.mxu0 0.0
    %453 = vmatprep.subr.mxu0 0.0
    %454 = vmatpush1.xpose.msra.mxu0 0.0
    %455 = vmatprep.subr.mxu0 0.0
    %456 = vmatpush1.xpose.msra.mxu0 0.0
    %457 = vmatprep.subr.mxu0 0.0
    %458 = vmatpush1.xpose.msra.mxu0 0.0
    %459 = vmatprep.subr.mxu0 0.0
    %460 = vmatpush1.xpose.msra.mxu0 0.0
    %461 = vmatprep.subr.mxu0 0.0
    %462 = vmatpush1.xpose.msra.mxu0 0.0
    %463 = vmatprep.subr.mxu0 0.0
    %464 = vmatpush1.xpose.msra.mxu0 0.0
    %465 = vmatprep.subr.mxu0 0.0
    %466 = vmatpush1.xpose.msra.mxu0 0.0
    %467 = vmatprep.subr.mxu0 0.0
    %468 = vmatpush1.xpose.msra.mxu0 0.0
    %469 = vmatprep.subr.mxu0 0.0
    %470 = vmatpush1.xpose.msra.mxu0 0.0
    %471 = vmatprep.subr.mxu0 0.0
    %472 = vmatpush1.xpose.msra.mxu0 0.0
    %473 = vmatprep.subr.mxu0 0.0
    %474 = vmatpush1.xpose.msra.mxu0 0.0
    %475 = vmatprep.subr.mxu0 0.0
    %476 = vmatpush1.xpose.msra.mxu0 0.0
    %477 = vmatprep.subr.mxu0 0.0
    %478 = vmatpush1.xpose.msra.mxu0 0.0
    %479 = vmatprep.subr.mxu0 0.0
    %480 = vmatpush1.xpose.msra.mxu0 0.0
    %481 = vmatprep.subr.mxu0 0.0
    %482 = vmatpush1.xpose.msra.mxu0 0.0
    %483 = vmatprep.subr.mxu0 0.0
    %484 = vmatpush1.xpose.msra.mxu0 0.0
    %485 = vmatprep.subr.mxu0 0.0
    %486 = vmatpush1.xpose.msra.mxu0 0.0
    %487 = vmatprep.subr.mxu0 0.0
    %488 = vmatpush1.xpose.msra.mxu0 0.0
    %489 = vmatprep.subr.mxu0 0.0
    %490 = vmatpush1.xpose.msra.mxu0 0.0
    %491 = vmatprep.subr.mxu0 0.0
    %492 = vmatpush1.xpose.msra.mxu0 0.0
    %493 = vmatprep.subr.mxu0 0.0
    %494 = vmatpush1.xpose.msra.mxu0 0.0
    %495 = vmatprep.subr.mxu0 0.0
    %496 = vmatpush1.xpose.msra.mxu0 0.0
    %497 = vmatprep.subr.mxu0 0.0
    %498 = vmatpush1.xpose.msra.mxu0 0.0
    %499 = vmatprep.mubr.f32.mxu0 0.0
    %500 = vmatmul.mubr.f32.gmra.mrb[0].mxu0 %v431
    %v501 = vpop.f32.mrb[0].mxu0
    %v502 = vadd.f32 %v175, %v501
    %v503 = vpop.f32.mrb[0].mxu0
    %504 = vdwg.mxu0
    %505 = vrot.lane.b32.xlu0 %v135, 96
    %v506 = vpop.permute.xlu0 %505
    %v507 = vsel %vm202, %v135, 0
    %v509 = vsel %vm202, %v506, 0
    %511 = vmatprep.subr.mxu0 0.0
    %512 = vmatpush1.xpose.msra.mxu0 %v509
    %513 = vmatprep.subr.mxu0 0.0
    %514 = vmatpush1.xpose.msra.mxu0 0.0
    %515 = vmatprep.subr.mxu0 0.0
    %516 = vmatpush1.xpose.msra.mxu0 0.0
    %517 = vmatprep.subr.mxu0 0.0
    %518 = vmatpush1.xpose.msra.mxu0 0.0
    %519 = vmatprep.subr.mxu0 0.0
    %520 = vmatpush1.xpose.msra.mxu0 0.0
    %521 = vmatprep.subr.mxu0 0.0
    %522 = vmatpush1.xpose.msra.mxu0 0.0
    %523 = vmatprep.subr.mxu0 0.0
    %524 = vmatpush1.xpose.msra.mxu0 0.0
    %525 = vmatprep.subr.mxu0 0.0
    %526 = vmatpush1.xpose.msra.mxu0 0.0
    %527 = vmatprep.subr.mxu0 0.0
    %528 = vmatpush1.xpose.msra.mxu0 0.0
    %529 = vmatprep.subr.mxu0 0.0
    %530 = vmatpush1.xpose.msra.mxu0 0.0
    %531 = vmatprep.subr.mxu0 0.0
    %532 = vmatpush1.xpose.msra.mxu0 0.0
    %533 = vmatprep.subr.mxu0 0.0
    %534 = vmatpush1.xpose.msra.mxu0 0.0
    %535 = vmatprep.subr.mxu0 0.0
    %536 = vmatpush1.xpose.msra.mxu0 0.0
    %537 = vmatprep.subr.mxu0 0.0
    %538 = vmatpush1.xpose.msra.mxu0 0.0
    %539 = vmatprep.subr.mxu0 0.0
    %540 = vmatpush1.xpose.msra.mxu0 0.0
    %541 = vmatprep.subr.mxu0 0.0
    %542 = vmatpush1.xpose.msra.mxu0 0.0
    %543 = vmatprep.subr.mxu0 0.0
    %544 = vmatpush1.xpose.msra.mxu0 0.0
    %545 = vmatprep.subr.mxu0 0.0
    %546 = vmatpush1.xpose.msra.mxu0 0.0
    %547 = vmatprep.subr.mxu0 0.0
    %548 = vmatpush1.xpose.msra.mxu0 0.0
    %549 = vmatprep.subr.mxu0 0.0
    %550 = vmatpush1.xpose.msra.mxu0 0.0
    %551 = vmatprep.subr.mxu0 0.0
    %552 = vmatpush1.xpose.msra.mxu0 0.0
    %553 = vmatprep.subr.mxu0 0.0
    %554 = vmatpush1.xpose.msra.mxu0 0.0
    %555 = vmatprep.subr.mxu0 0.0
    %556 = vmatpush1.xpose.msra.mxu0 0.0
    %557 = vmatprep.subr.mxu0 0.0
    %558 = vmatpush1.xpose.msra.mxu0 0.0
    %559 = vmatprep.subr.mxu0 0.0
    %560 = vmatpush1.xpose.msra.mxu0 0.0
    %561 = vmatprep.subr.mxu0 0.0
    %562 = vmatpush1.xpose.msra.mxu0 0.0
    %563 = vmatprep.subr.mxu0 0.0
    %564 = vmatpush1.xpose.msra.mxu0 0.0
    %565 = vmatprep.subr.mxu0 0.0
    %566 = vmatpush1.xpose.msra.mxu0 0.0
    %567 = vmatprep.subr.mxu0 0.0
    %568 = vmatpush1.xpose.msra.mxu0 0.0
    %569 = vmatprep.subr.mxu0 0.0
    %570 = vmatpush1.xpose.msra.mxu0 0.0
    %571 = vmatprep.subr.mxu0 0.0
    %572 = vmatpush1.xpose.msra.mxu0 0.0
    %573 = vmatprep.subr.mxu0 0.0
    %574 = vmatpush1.xpose.msra.mxu0 0.0
    %575 = vmatprep.mubr.f32.mxu0 0.0
    %576 = vmatmul.mubr.f32.gmra.mrb[0].mxu0 %v507
    %v577 = vpop.f32.mrb[0].mxu0
    %v578 = vadd.f32 %v179, %v577
    %v579 = vpop.f32.mrb[0].mxu0
    %580 = vdwg.mxu0
    %581 = vrot.lane.b32.xlu0 %v147, 96
    %v582 = vpop.permute.xlu0 %581
    %v583 = vsel %vm202, %v147, 0
    %v585 = vsel %vm202, %v582, 0
    %587 = vmatprep.subr.mxu0 0.0
    %588 = vmatpush1.xpose.msra.mxu0 %v585
    %589 = vmatprep.subr.mxu0 0.0
    %590 = vmatpush1.xpose.msra.mxu0 0.0
    %591 = vmatprep.subr.mxu0 0.0
    %592 = vmatpush1.xpose.msra.mxu0 0.0
    %593 = vmatprep.subr.mxu0 0.0
    %594 = vmatpush1.xpose.msra.mxu0 0.0
    %595 = vmatprep.subr.mxu0 0.0
    %596 = vmatpush1.xpose.msra.mxu0 0.0
    %597 = vmatprep.subr.mxu0 0.0
    %598 = vmatpush1.xpose.msra.mxu0 0.0
    %599 = vmatprep.subr.mxu0 0.0
    %600 = vmatpush1.xpose.msra.mxu0 0.0
    %601 = vmatprep.subr.mxu0 0.0
    %602 = vmatpush1.xpose.msra.mxu0 0.0
    %603 = vmatprep.subr.mxu0 0.0
    %604 = vmatpush1.xpose.msra.mxu0 0.0
    %605 = vmatprep.subr.mxu0 0.0
    %606 = vmatpush1.xpose.msra.mxu0 0.0
    %607 = vmatprep.subr.mxu0 0.0
    %608 = vmatpush1.xpose.msra.mxu0 0.0
    %609 = vmatprep.subr.mxu0 0.0
    %610 = vmatpush1.xpose.msra.mxu0 0.0
    %611 = vmatprep.subr.mxu0 0.0
    %612 = vmatpush1.xpose.msra.mxu0 0.0
    %613 = vmatprep.subr.mxu0 0.0
    %614 = vmatpush1.xpose.msra.mxu0 0.0
    %615 = vmatprep.subr.mxu0 0.0
    %616 = vmatpush1.xpose.msra.mxu0 0.0
    %617 = vmatprep.subr.mxu0 0.0
    %618 = vmatpush1.xpose.msra.mxu0 0.0
    %619 = vmatprep.subr.mxu0 0.0
    %620 = vmatpush1.xpose.msra.mxu0 0.0
    %621 = vmatprep.subr.mxu0 0.0
    %622 = vmatpush1.xpose.msra.mxu0 0.0
    %623 = vmatprep.subr.mxu0 0.0
    %624 = vmatpush1.xpose.msra.mxu0 0.0
    %625 = vmatprep.subr.mxu0 0.0
    %626 = vmatpush1.xpose.msra.mxu0 0.0
    %627 = vmatprep.subr.mxu0 0.0
    %628 = vmatpush1.xpose.msra.mxu0 0.0
    %629 = vmatprep.subr.mxu0 0.0
    %630 = vmatpush1.xpose.msra.mxu0 0.0
    %631 = vmatprep.subr.mxu0 0.0
    %632 = vmatpush1.xpose.msra.mxu0 0.0
    %633 = vmatprep.subr.mxu0 0.0
    %634 = vmatpush1.xpose.msra.mxu0 0.0
    %635 = vmatprep.subr.mxu0 0.0
    %636 = vmatpush1.xpose.msra.mxu0 0.0
    %637 = vmatprep.subr.mxu0 0.0
    %638 = vmatpush1.xpose.msra.mxu0 0.0
    %639 = vmatprep.subr.mxu0 0.0
    %640 = vmatpush1.xpose.msra.mxu0 0.0
    %641 = vmatprep.subr.mxu0 0.0
    %642 = vmatpush1.xpose.msra.mxu0 0.0
    %643 = vmatprep.subr.mxu0 0.0
    %644 = vmatpush1.xpose.msra.mxu0 0.0
    %645 = vmatprep.subr.mxu0 0.0
    %646 = vmatpush1.xpose.msra.mxu0 0.0
    %647 = vmatprep.subr.mxu0 0.0
    %648 = vmatpush1.xpose.msra.mxu0 0.0
    %649 = vmatprep.subr.mxu0 0.0
    %650 = vmatpush1.xpose.msra.mxu0 0.0
    %651 = vmatprep.mubr.f32.mxu0 0.0
    %652 = vmatmul.mubr.f32.gmra.mrb[0].mxu0 %v583
    %v653 = vpop.f32.mrb[0].mxu0
    %v654 = vadd.f32 %v183, %v653
    %v655 = vpop.f32.mrb[0].mxu0
    %656 = vdwg.mxu0
    %657 = vrot.lane.b32.xlu0 %v149, 96
    %v658 = vpop.permute.xlu0 %657
    %v659 = vsel %vm202, %v149, 0
    %v661 = vsel %vm202, %v658, 0
    %663 = vmatprep.subr.mxu0 0.0
    %664 = vmatpush1.xpose.msra.mxu0 %v661
    %665 = vmatprep.subr.mxu0 0.0
    %666 = vmatpush1.xpose.msra.mxu0 0.0
    %667 = vmatprep.subr.mxu0 0.0
    %668 = vmatpush1.xpose.msra.mxu0 0.0
    %669 = vmatprep.subr.mxu0 0.0
    %670 = vmatpush1.xpose.msra.mxu0 0.0
    %671 = vmatprep.subr.mxu0 0.0
    %672 = vmatpush1.xpose.msra.mxu0 0.0
    %673 = vmatprep.subr.mxu0 0.0
    %674 = vmatpush1.xpose.msra.mxu0 0.0
    %675 = vmatprep.subr.mxu0 0.0
    %676 = vmatpush1.xpose.msra.mxu0 0.0
    %677 = vmatprep.subr.mxu0 0.0
    %678 = vmatpush1.xpose.msra.mxu0 0.0
    %679 = vmatprep.subr.mxu0 0.0
    %680 = vmatpush1.xpose.msra.mxu0 0.0
    %681 = vmatprep.subr.mxu0 0.0
    %682 = vmatpush1.xpose.msra.mxu0 0.0
    %683 = vmatprep.subr.mxu0 0.0
    %684 = vmatpush1.xpose.msra.mxu0 0.0
    %685 = vmatprep.subr.mxu0 0.0
    %686 = vmatpush1.xpose.msra.mxu0 0.0
    %687 = vmatprep.subr.mxu0 0.0
    %688 = vmatpush1.xpose.msra.mxu0 0.0
    %689 = vmatprep.subr.mxu0 0.0
    %690 = vmatpush1.xpose.msra.mxu0 0.0
    %691 = vmatprep.subr.mxu0 0.0
    %692 = vmatpush1.xpose.msra.mxu0 0.0
    %693 = vmatprep.subr.mxu0 0.0
    %694 = vmatpush1.xpose.msra.mxu0 0.0
    %695 = vmatprep.subr.mxu0 0.0
    %696 = vmatpush1.xpose.msra.mxu0 0.0
    %697 = vmatprep.subr.mxu0 0.0
    %698 = vmatpush1.xpose.msra.mxu0 0.0
    %699 = vmatprep.subr.mxu0 0.0
    %700 = vmatpush1.xpose.msra.mxu0 0.0
    %701 = vmatprep.subr.mxu0 0.0
    %702 = vmatpush1.xpose.msra.mxu0 0.0
    %703 = vmatprep.subr.mxu0 0.0
    %704 = vmatpush1.xpose.msra.mxu0 0.0
    %705 = vmatprep.subr.mxu0 0.0
    %706 = vmatpush1.xpose.msra.mxu0 0.0
    %707 = vmatprep.subr.mxu0 0.0
    %708 = vmatpush1.xpose.msra.mxu0 0.0
    %709 = vmatprep.subr.mxu0 0.0
    %710 = vmatpush1.xpose.msra.mxu0 0.0
    %711 = vmatprep.subr.mxu0 0.0
    %712 = vmatpush1.xpose.msra.mxu0 0.0
    %713 = vmatprep.subr.mxu0 0.0
    %714 = vmatpush1.xpose.msra.mxu0 0.0
    %715 = vmatprep.subr.mxu0 0.0
    %716 = vmatpush1.xpose.msra.mxu0 0.0
    %717 = vmatprep.subr.mxu0 0.0
    %718 = vmatpush1.xpose.msra.mxu0 0.0
    %719 = vmatprep.subr.mxu0 0.0
    %720 = vmatpush1.xpose.msra.mxu0 0.0
    %721 = vmatprep.subr.mxu0 0.0
    %722 = vmatpush1.xpose.msra.mxu0 0.0
    %723 = vmatprep.subr.mxu0 0.0
    %724 = vmatpush1.xpose.msra.mxu0 0.0
    %725 = vmatprep.subr.mxu0 0.0
    %726 = vmatpush1.xpose.msra.mxu0 0.0
    %727 = vmatprep.mubr.f32.mxu0 0.0
    %728 = vmatmul.mubr.f32.gmra.mrb[0].mxu0 %v659
    %v729 = vpop.f32.mrb[0].mxu0
    %v730 = vadd.f32 %v187, %v729
    %v731 = vpop.f32.mrb[0].mxu0
    %732 = vdwg.mxu0
    %733 = vrot.lane.b32.xlu0 %v151, 96
    %v734 = vpop.permute.xlu0 %733
    %v735 = vsel %vm202, %v151, 0
    %v737 = vsel %vm202, %v734, 0
    %739 = vmatprep.subr.mxu0 0.0
    %740 = vmatpush1.xpose.msra.mxu0 %v737
    %741 = vmatprep.subr.mxu0 0.0
    %742 = vmatpush1.xpose.msra.mxu0 0.0
    %743 = vmatprep.subr.mxu0 0.0
    %744 = vmatpush1.xpose.msra.mxu0 0.0
    %745 = vmatprep.subr.mxu0 0.0
    %746 = vmatpush1.xpose.msra.mxu0 0.0
    %747 = vmatprep.subr.mxu0 0.0
    %748 = vmatpush1.xpose.msra.mxu0 0.0
    %749 = vmatprep.subr.mxu0 0.0
    %750 = vmatpush1.xpose.msra.mxu0 0.0
    %751 = vmatprep.subr.mxu0 0.0
    %752 = vmatpush1.xpose.msra.mxu0 0.0
    %753 = vmatprep.subr.mxu0 0.0
    %754 = vmatpush1.xpose.msra.mxu0 0.0
    %755 = vmatprep.subr.mxu0 0.0
    %756 = vmatpush1.xpose.msra.mxu0 0.0
    %757 = vmatprep.subr.mxu0 0.0
    %758 = vmatpush1.xpose.msra.mxu0 0.0
    %759 = vmatprep.subr.mxu0 0.0
    %760 = vmatpush1.xpose.msra.mxu0 0.0
    %761 = vmatprep.subr.mxu0 0.0
    %762 = vmatpush1.xpose.msra.mxu0 0.0
    %763 = vmatprep.subr.mxu0 0.0
    %764 = vmatpush1.xpose.msra.mxu0 0.0
    %765 = vmatprep.subr.mxu0 0.0
    %766 = vmatpush1.xpose.msra.mxu0 0.0
    %767 = vmatprep.subr.mxu0 0.0
    %768 = vmatpush1.xpose.msra.mxu0 0.0
    %769 = vmatprep.subr.mxu0 0.0
    %770 = vmatpush1.xpose.msra.mxu0 0.0
    %771 = vmatprep.subr.mxu0 0.0
    %772 = vmatpush1.xpose.msra.mxu0 0.0
    %773 = vmatprep.subr.mxu0 0.0
    %774 = vmatpush1.xpose.msra.mxu0 0.0
    %775 = vmatprep.subr.mxu0 0.0
    %776 = vmatpush1.xpose.msra.mxu0 0.0
    %777 = vmatprep.subr.mxu0 0.0
    %778 = vmatpush1.xpose.msra.mxu0 0.0
    %779 = vmatprep.subr.mxu0 0.0
    %780 = vmatpush1.xpose.msra.mxu0 0.0
    %781 = vmatprep.subr.mxu0 0.0
    %782 = vmatpush1.xpose.msra.mxu0 0.0
    %783 = vmatprep.subr.mxu0 0.0
    %784 = vmatpush1.xpose.msra.mxu0 0.0
    %785 = vmatprep.subr.mxu0 0.0
    %786 = vmatpush1.xpose.msra.mxu0 0.0
    %787 = vmatprep.subr.mxu0 0.0
    %788 = vmatpush1.xpose.msra.mxu0 0.0
    %789 = vmatprep.subr.mxu0 0.0
    %790 = vmatpush1.xpose.msra.mxu0 0.0
    %791 = vmatprep.subr.mxu0 0.0
    %792 = vmatpush1.xpose.msra.mxu0 0.0
    %793 = vmatprep.subr.mxu0 0.0
    %794 = vmatpush1.xpose.msra.mxu0 0.0
    %795 = vmatprep.subr.mxu0 0.0
    %796 = vmatpush1.xpose.msra.mxu0 0.0
    %797 = vmatprep.subr.mxu0 0.0
    %798 = vmatpush1.xpose.msra.mxu0 0.0
    %799 = vmatprep.subr.mxu0 0.0
    %800 = vmatpush1.xpose.msra.mxu0 0.0
    %801 = vmatprep.subr.mxu0 0.0
    %802 = vmatpush1.xpose.msra.mxu0 0.0
    %803 = vmatprep.mubr.f32.mxu0 0.0
    %804 = vmatmul.mubr.f32.gmra.mrb[0].mxu0 %v735
    %v805 = vpop.f32.mrb[0].mxu0
    %v806 = vadd.f32 %v191, %v805
    %v807 = vpop.f32.mrb[0].mxu0
    %808 = vdwg.mxu0
    %v809 = vsel %vm202, %v274, -inf
    %810 = vmax.xlane.f32.xlu0 %v809
    %v811 = vpop.xlane.xlu0 %810
    %v812 = vsel %vm202, %v350, -inf
    %813 = vmax.xlane.f32.xlu0 %v812
    %v814 = vpop.xlane.xlu0 %813
    %v815 = vsel %vm202, %v426, -inf
    %816 = vmax.xlane.f32.xlu0 %v815
    %v817 = vpop.xlane.xlu0 %816
    %v818 = vsel %vm202, %v502, -inf
    %819 = vmax.xlane.f32.xlu0 %v818
    %v820 = vpop.xlane.xlu0 %819
    %v821 = vsel %vm202, %v578, -inf
    %822 = vmax.xlane.f32.xlu0 %v821
    %v823 = vpop.xlane.xlu0 %822
    %v824 = vsel %vm202, %v654, -inf
    %825 = vmax.xlane.f32.xlu0 %v824
    %v826 = vpop.xlane.xlu0 %825
    %v827 = vsel %vm202, %v730, -inf
    %828 = vmax.xlane.f32.xlu0 %v827
    %v829 = vpop.xlane.xlu0 %828
    %v830 = vsel %vm202, %v806, -inf
    %831 = vmax.xlane.f32.xlu0 %v830
    %v832 = vpop.xlane.xlu0 %831
    %v833 = vsub.f32 %v274, %v811
    %v834 = vsub.f32 %v350, %v814
    %v835 = vsub.f32 %v426, %v817
    %v836 = vsub.f32 %v502, %v820
    %v837 = vsub.f32 %v578, %v823
    %v838 = vsub.f32 %v654, %v826
    %v839 = vsub.f32 %v730, %v829
    %v840 = vsub.f32 %v806, %v832
    %v841 = vmul.f32 %v833, 1.442695
    %v842 = vpow.pop %v841
    %v843 = vmul.f32 %v834, 1.442695
    %v844 = vpow.pop %v843
    %v845 = vmul.f32 %v835, 1.442695
    %v846 = vpow.pop %v845
    %v847 = vmul.f32 %v836, 1.442695
    %v848 = vpow.pop %v847
    %v849 = vmul.f32 %v837, 1.442695
    %v850 = vpow.pop %v849
    %v851 = vmul.f32 %v838, 1.442695
    %v852 = vpow.pop %v851
    %v853 = vmul.f32 %v839, 1.442695
    %v854 = vpow.pop %v853
    %v855 = vmul.f32 %v840, 1.442695
    %v856 = vpow.pop %v855
    %v857 = vsel %vm202, %v842, 0.0
    %858 = vadd.xlane.f32.xlu0 %v857
    %v859 = vpop.xlane.xlu0 %858
    %v860 = vsel %vm202, %v844, 0.0
    %861 = vadd.xlane.f32.xlu0 %v860
    %v862 = vpop.xlane.xlu0 %861
    %v863 = vsel %vm202, %v846, 0.0
    %864 = vadd.xlane.f32.xlu0 %v863
    %v865 = vpop.xlane.xlu0 %864
    %v866 = vsel %vm202, %v848, 0.0
    %867 = vadd.xlane.f32.xlu0 %v866
    %v868 = vpop.xlane.xlu0 %867
    %v869 = vsel %vm202, %v850, 0.0
    %870 = vadd.xlane.f32.xlu0 %v869
    %v871 = vpop.xlane.xlu0 %870
    %v872 = vsel %vm202, %v852, 0.0
    %873 = vadd.xlane.f32.xlu0 %v872
    %v874 = vpop.xlane.xlu0 %873
    %v875 = vsel %vm202, %v854, 0.0
    %876 = vadd.xlane.f32.xlu0 %v875
    %v877 = vpop.xlane.xlu0 %876
    %v878 = vsel %vm202, %v856, 0.0
    %879 = vadd.xlane.f32.xlu0 %v878
    %v880 = vpop.xlane.xlu0 %879
    %v881 = vrcp.pop %v859
    %v882 = vrcp.pop %v862
    %v883 = vrcp.pop %v865
    %v884 = vrcp.pop %v868
    %v885 = vrcp.pop %v871
    %v886 = vrcp.pop %v874
    %v887 = vrcp.pop %v877
    %v888 = vrcp.pop %v880
    %v889 = vmul.f32 %v842, %v881
    %v890 = vmul.f32 %v844, %v882
    %v891 = vmul.f32 %v846, %v883
    %v892 = vmul.f32 %v848, %v884
    %v893 = vmul.f32 %v850, %v885
    %v894 = vmul.f32 %v852, %v886
    %v895 = vmul.f32 %v854, %v887
    %v896 = vmul.f32 %v856, %v888
    %897 = vrot.lane.b32.xlu0 %v130, 64
    %v898 = vpop.permute.xlu0 %897
    %v901 = vsel %vm202, %v889, 0
    %903 = vmatprep.subr.mxu0 0.0
    %904 = vmatpush1.msra.mxu0 %v898
    %905 = vmatprep.subr.mxu0 0.0
    %906 = vmatpush1.msra.mxu0 0.0
    %907 = vmatprep.subr.mxu0 0.0
    %908 = vmatpush1.msra.mxu0 0.0
    %909 = vmatprep.subr.mxu0 0.0
    %910 = vmatpush1.msra.mxu0 0.0
    %911 = vmatprep.subr.mxu0 0.0
    %912 = vmatpush1.msra.mxu0 0.0
    %913 = vmatprep.subr.mxu0 0.0
    %914 = vmatpush1.msra.mxu0 0.0
    %915 = vmatprep.subr.mxu0 0.0
    %916 = vmatpush1.msra.mxu0 0.0
    %917 = vmatprep.subr.mxu0 0.0
    %918 = vmatpush1.msra.mxu0 0.0
    %919 = vmatprep.subr.mxu0 0.0
    %920 = vmatpush1.msra.mxu0 0.0
    %921 = vmatprep.subr.mxu0 0.0
    %922 = vmatpush1.msra.mxu0 0.0
    %923 = vmatprep.subr.mxu0 0.0
    %924 = vmatpush1.msra.mxu0 0.0
    %925 = vmatprep.subr.mxu0 0.0
    %926 = vmatpush1.msra.mxu0 0.0
    %927 = vmatprep.subr.mxu0 0.0
    %928 = vmatpush1.msra.mxu0 0.0
    %929 = vmatprep.subr.mxu0 0.0
    %930 = vmatpush1.msra.mxu0 0.0
    %931 = vmatprep.subr.mxu0 0.0
    %932 = vmatpush1.msra.mxu0 0.0
    %933 = vmatprep.subr.mxu0 0.0
    %934 = vmatpush1.msra.mxu0 0.0
    %935 = vmatprep.subr.mxu0 0.0
    %936 = vmatpush1.msra.mxu0 0.0
    %937 = vmatprep.subr.mxu0 0.0
    %938 = vmatpush1.msra.mxu0 0.0
    %939 = vmatprep.subr.mxu0 0.0
    %940 = vmatpush1.msra.mxu0 0.0
    %941 = vmatprep.subr.mxu0 0.0
    %942 = vmatpush1.msra.mxu0 0.0
    %943 = vmatprep.subr.mxu0 0.0
    %944 = vmatpush1.msra.mxu0 0.0
    %945 = vmatprep.subr.mxu0 0.0
    %946 = vmatpush1.msra.mxu0 0.0
    %947 = vmatprep.subr.mxu0 0.0
    %948 = vmatpush1.msra.mxu0 0.0
    %949 = vmatprep.subr.mxu0 0.0
    %950 = vmatpush1.msra.mxu0 0.0
    %951 = vmatprep.subr.mxu0 0.0
    %952 = vmatpush1.msra.mxu0 0.0
    %953 = vmatprep.subr.mxu0 0.0
    %954 = vmatpush1.msra.mxu0 0.0
    %955 = vmatprep.subr.mxu0 0.0
    %956 = vmatpush1.msra.mxu0 0.0
    %957 = vmatprep.subr.mxu0 0.0
    %958 = vmatpush1.msra.mxu0 0.0
    %959 = vmatprep.subr.mxu0 0.0
    %960 = vmatpush1.msra.mxu0 0.0
    %961 = vmatprep.subr.mxu0 0.0
    %962 = vmatpush1.msra.mxu0 0.0
    %963 = vmatprep.subr.mxu0 0.0
    %964 = vmatpush1.msra.mxu0 0.0
    %965 = vmatprep.subr.mxu0 0.0
    %966 = vmatpush1.msra.mxu0 0.0
    %967 = vmatprep.mubr.f32.mxu0 0.0
    %968 = vmatmul.mubr.f32.gmra.mrb[0].mxu0 %v901
    %v969 = vpop.f32.mrb[0].mxu0
    %v970 = vadd.f32 0.0, %v969
    %v971 = vpop.f32.mrb[0].mxu0
    %972 = vdwg.mxu0
    %973 = vrot.lane.b32.xlu0 %v140, 64
    %v974 = vpop.permute.xlu0 %973
    %v977 = vsel %vm202, %v890, 0
    %979 = vmatprep.subr.mxu0 0.0
    %980 = vmatpush1.msra.mxu0 %v974
    %981 = vmatprep.subr.mxu0 0.0
    %982 = vmatpush1.msra.mxu0 0.0
    %983 = vmatprep.subr.mxu0 0.0
    %984 = vmatpush1.msra.mxu0 0.0
    %985 = vmatprep.subr.mxu0 0.0
    %986 = vmatpush1.msra.mxu0 0.0
    %987 = vmatprep.subr.mxu0 0.0
    %988 = vmatpush1.msra.mxu0 0.0
    %989 = vmatprep.subr.mxu0 0.0
    %990 = vmatpush1.msra.mxu0 0.0
    %991 = vmatprep.subr.mxu0 0.0
    %992 = vmatpush1.msra.mxu0 0.0
    %993 = vmatprep.subr.mxu0 0.0
    %994 = vmatpush1.msra.mxu0 0.0
    %995 = vmatprep.subr.mxu0 0.0
    %996 = vmatpush1.msra.mxu0 0.0
    %997 = vmatprep.subr.mxu0 0.0
    %998 = vmatpush1.msra.mxu0 0.0
    %999 = vmatprep.subr.mxu0 0.0
    %1000 = vmatpush1.msra.mxu0 0.0
    %1001 = vmatprep.subr.mxu0 0.0
    %1002 = vmatpush1.msra.mxu0 0.0
    %1003 = vmatprep.subr.mxu0 0.0
    %1004 = vmatpush1.msra.mxu0 0.0
    %1005 = vmatprep.subr.mxu0 0.0
    %1006 = vmatpush1.msra.mxu0 0.0
    %1007 = vmatprep.subr.mxu0 0.0
    %1008 = vmatpush1.msra.mxu0 0.0
    %1009 = vmatprep.subr.mxu0 0.0
    %1010 = vmatpush1.msra.mxu0 0.0
    %1011 = vmatprep.subr.mxu0 0.0
    %1012 = vmatpush1.msra.mxu0 0.0
    %1013 = vmatprep.subr.mxu0 0.0
    %1014 = vmatpush1.msra.mxu0 0.0
    %1015 = vmatprep.subr.mxu0 0.0
    %1016 = vmatpush1.msra.mxu0 0.0
    %1017 = vmatprep.subr.mxu0 0.0
    %1018 = vmatpush1.msra.mxu0 0.0
    %1019 = vmatprep.subr.mxu0 0.0
    %1020 = vmatpush1.msra.mxu0 0.0
    %1021 = vmatprep.subr.mxu0 0.0
    %1022 = vmatpush1.msra.mxu0 0.0
    %1023 = vmatprep.subr.mxu0 0.0
    %1024 = vmatpush1.msra.mxu0 0.0
    %1025 = vmatprep.subr.mxu0 0.0
    %1026 = vmatpush1.msra.mxu0 0.0
    %1027 = vmatprep.subr.mxu0 0.0
    %1028 = vmatpush1.msra.mxu0 0.0
    %1029 = vmatprep.subr.mxu0 0.0
    %1030 = vmatpush1.msra.mxu0 0.0
    %1031 = vmatprep.subr.mxu0 0.0
    %1032 = vmatpush1.msra.mxu0 0.0
    %1033 = vmatprep.subr.mxu0 0.0
    %1034 = vmatpush1.msra.mxu0 0.0
    %1035 = vmatprep.subr.mxu0 0.0
    %1036 = vmatpush1.msra.mxu0 0.0
    %1037 = vmatprep.subr.mxu0 0.0
    %1038 = vmatpush1.msra.mxu0 0.0
    %1039 = vmatprep.subr.mxu0 0.0
    %1040 = vmatpush1.msra.mxu0 0.0
    %1041 = vmatprep.subr.mxu0 0.0
    %1042 = vmatpush1.msra.mxu0 0.0
    %1043 = vmatprep.mubr.f32.mxu0 0.0
    %1044 = vmatmul.mubr.f32.gmra.mrb[0].mxu0 %v977
    %v1045 = vpop.f32.mrb[0].mxu0
    %v1046 = vadd.f32 0.0, %v1045
    %v1047 = vpop.f32.mrb[0].mxu0
    %1048 = vdwg.mxu0
    %1049 = vrot.lane.b32.xlu0 %v142, 64
    %v1050 = vpop.permute.xlu0 %1049
    %v1053 = vsel %vm202, %v891, 0
    %1055 = vmatprep.subr.mxu0 0.0
    %1056 = vmatpush1.msra.mxu0 %v1050
    %1057 = vmatprep.subr.mxu0 0.0
    %1058 = vmatpush1.msra.mxu0 0.0
    %1059 = vmatprep.subr.mxu0 0.0
    %1060 = vmatpush1.msra.mxu0 0.0
    %1061 = vmatprep.subr.mxu0 0.0
    %1062 = vmatpush1.msra.mxu0 0.0
    %1063 = vmatprep.subr.mxu0 0.0
    %1064 = vmatpush1.msra.mxu0 0.0
    %1065 = vmatprep.subr.mxu0 0.0
    %1066 = vmatpush1.msra.mxu0 0.0
    %1067 = vmatprep.subr.mxu0 0.0
    %1068 = vmatpush1.msra.mxu0 0.0
    %1069 = vmatprep.subr.mxu0 0.0
    %1070 = vmatpush1.msra.mxu0 0.0
    %1071 = vmatprep.subr.mxu0 0.0
    %1072 = vmatpush1.msra.mxu0 0.0
    %1073 = vmatprep.subr.mxu0 0.0
    %1074 = vmatpush1.msra.mxu0 0.0
    %1075 = vmatprep.subr.mxu0 0.0
    %1076 = vmatpush1.msra.mxu0 0.0
    %1077 = vmatprep.subr.mxu0 0.0
    %1078 = vmatpush1.msra.mxu0 0.0
    %1079 = vmatprep.subr.mxu0 0.0
    %1080 = vmatpush1.msra.mxu0 0.0
    %1081 = vmatprep.subr.mxu0 0.0
    %1082 = vmatpush1.msra.mxu0 0.0
    %1083 = vmatprep.subr.mxu0 0.0
    %1084 = vmatpush1.msra.mxu0 0.0
    %1085 = vmatprep.subr.mxu0 0.0
    %1086 = vmatpush1.msra.mxu0 0.0
    %1087 = vmatprep.subr.mxu0 0.0
    %1088 = vmatpush1.msra.mxu0 0.0
    %1089 = vmatprep.subr.mxu0 0.0
    %1090 = vmatpush1.msra.mxu0 0.0
    %1091 = vmatprep.subr.mxu0 0.0
    %1092 = vmatpush1.msra.mxu0 0.0
    %1093 = vmatprep.subr.mxu0 0.0
    %1094 = vmatpush1.msra.mxu0 0.0
    %1095 = vmatprep.subr.mxu0 0.0
    %1096 = vmatpush1.msra.mxu0 0.0
    %1097 = vmatprep.subr.mxu0 0.0
    %1098 = vmatpush1.msra.mxu0 0.0
    %1099 = vmatprep.subr.mxu0 0.0
    %1100 = vmatpush1.msra.mxu0 0.0
    %1101 = vmatprep.subr.mxu0 0.0
    %1102 = vmatpush1.msra.mxu0 0.0
    %1103 = vmatprep.subr.mxu0 0.0
    %1104 = vmatpush1.msra.mxu0 0.0
    %1105 = vmatprep.subr.mxu0 0.0
    %1106 = vmatpush1.msra.mxu0 0.0
    %1107 = vmatprep.subr.mxu0 0.0
    %1108 = vmatpush1.msra.mxu0 0.0
    %1109 = vmatprep.subr.mxu0 0.0
    %1110 = vmatpush1.msra.mxu0 0.0
    %1111 = vmatprep.subr.mxu0 0.0
    %1112 = vmatpush1.msra.mxu0 0.0
    %1113 = vmatprep.subr.mxu0 0.0
    %1114 = vmatpush1.msra.mxu0 0.0
    %1115 = vmatprep.subr.mxu0 0.0
    %1116 = vmatpush1.msra.mxu0 0.0
    %1117 = vmatprep.subr.mxu0 0.0
    %1118 = vmatpush1.msra.mxu0 0.0
    %1119 = vmatprep.mubr.f32.mxu0 0.0
    %1120 = vmatmul.mubr.f32.gmra.mrb[0].mxu0 %v1053
    %v1121 = vpop.f32.mrb[0].mxu0
    %v1122 = vadd.f32 0.0, %v1121
    %v1123 = vpop.f32.mrb[0].mxu0
    %1124 = vdwg.mxu0
    %1125 = vrot.lane.b32.xlu0 %v144, 64
    %v1126 = vpop.permute.xlu0 %1125
    %v1129 = vsel %vm202, %v892, 0
    %1131 = vmatprep.subr.mxu0 0.0
    %1132 = vmatpush1.msra.mxu0 %v1126
    %1133 = vmatprep.subr.mxu0 0.0
    %1134 = vmatpush1.msra.mxu0 0.0
    %1135 = vmatprep.subr.mxu0 0.0
    %1136 = vmatpush1.msra.mxu0 0.0
    %1137 = vmatprep.subr.mxu0 0.0
    %1138 = vmatpush1.msra.mxu0 0.0
    %1139 = vmatprep.subr.mxu0 0.0
    %1140 = vmatpush1.msra.mxu0 0.0
    %1141 = vmatprep.subr.mxu0 0.0
    %1142 = vmatpush1.msra.mxu0 0.0
    %1143 = vmatprep.subr.mxu0 0.0
    %1144 = vmatpush1.msra.mxu0 0.0
    %1145 = vmatprep.subr.mxu0 0.0
    %1146 = vmatpush1.msra.mxu0 0.0
    %1147 = vmatprep.subr.mxu0 0.0
    %1148 = vmatpush1.msra.mxu0 0.0
    %1149 = vmatprep.subr.mxu0 0.0
    %1150 = vmatpush1.msra.mxu0 0.0
    %1151 = vmatprep.subr.mxu0 0.0
    %1152 = vmatpush1.msra.mxu0 0.0
    %1153 = vmatprep.subr.mxu0 0.0
    %1154 = vmatpush1.msra.mxu0 0.0
    %1155 = vmatprep.subr.mxu0 0.0
    %1156 = vmatpush1.msra.mxu0 0.0
    %1157 = vmatprep.subr.mxu0 0.0
    %1158 = vmatpush1.msra.mxu0 0.0
    %1159 = vmatprep.subr.mxu0 0.0
    %1160 = vmatpush1.msra.mxu0 0.0
    %1161 = vmatprep.subr.mxu0 0.0
    %1162 = vmatpush1.msra.mxu0 0.0
    %1163 = vmatprep.subr.mxu0 0.0
    %1164 = vmatpush1.msra.mxu0 0.0
    %1165 = vmatprep.subr.mxu0 0.0
    %1166 = vmatpush1.msra.mxu0 0.0
    %1167 = vmatprep.subr.mxu0 0.0
    %1168 = vmatpush1.msra.mxu0 0.0
    %1169 = vmatprep.subr.mxu0 0.0
    %1170 = vmatpush1.msra.mxu0 0.0
    %1171 = vmatprep.subr.mxu0 0.0
    %1172 = vmatpush1.msra.mxu0 0.0
    %1173 = vmatprep.subr.mxu0 0.0
    %1174 = vmatpush1.msra.mxu0 0.0
    %1175 = vmatprep.subr.mxu0 0.0
    %1176 = vmatpush1.msra.mxu0 0.0
    %1177 = vmatprep.subr.mxu0 0.0
    %1178 = vmatpush1.msra.mxu0 0.0
    %1179 = vmatprep.subr.mxu0 0.0
    %1180 = vmatpush1.msra.mxu0 0.0
    %1181 = vmatprep.subr.mxu0 0.0
    %1182 = vmatpush1.msra.mxu0 0.0
    %1183 = vmatprep.subr.mxu0 0.0
    %1184 = vmatpush1.msra.mxu0 0.0
    %1185 = vmatprep.subr.mxu0 0.0
    %1186 = vmatpush1.msra.mxu0 0.0
    %1187 = vmatprep.subr.mxu0 0.0
    %1188 = vmatpush1.msra.mxu0 0.0
    %1189 = vmatprep.subr.mxu0 0.0
    %1190 = vmatpush1.msra.mxu0 0.0
    %1191 = vmatprep.subr.mxu0 0.0
    %1192 = vmatpush1.msra.mxu0 0.0
    %1193 = vmatprep.subr.mxu0 0.0
    %1194 = vmatpush1.msra.mxu0 0.0
    %1195 = vmatprep.mubr.f32.mxu0 0.0
    %1196 = vmatmul.mubr.f32.gmra.mrb[0].mxu0 %v1129
    %v1197 = vpop.f32.mrb[0].mxu0
    %v1198 = vadd.f32 0.0, %v1197
    %v1199 = vpop.f32.mrb[0].mxu0
    %1200 = vdwg.mxu0
    %1201 = vrot.lane.b32.xlu0 %v135, 64
    %v1202 = vpop.permute.xlu0 %1201
    %v1205 = vsel %vm202, %v893, 0
    %1207 = vmatprep.subr.mxu0 0.0
    %1208 = vmatpush1.msra.mxu0 %v1202
    %1209 = vmatprep.subr.mxu0 0.0
    %1210 = vmatpush1.msra.mxu0 0.0
    %1211 = vmatprep.subr.mxu0 0.0
    %1212 = vmatpush1.msra.mxu0 0.0
    %1213 = vmatprep.subr.mxu0 0.0
    %1214 = vmatpush1.msra.mxu0 0.0
    %1215 = vmatprep.subr.mxu0 0.0
    %1216 = vmatpush1.msra.mxu0 0.0
    %1217 = vmatprep.subr.mxu0 0.0
    %1218 = vmatpush1.msra.mxu0 0.0
    %1219 = vmatprep.subr.mxu0 0.0
    %1220 = vmatpush1.msra.mxu0 0.0
    %1221 = vmatprep.subr.mxu0 0.0
    %1222 = vmatpush1.msra.mxu0 0.0
    %1223 = vmatprep.subr.mxu0 0.0
    %1224 = vmatpush1.msra.mxu0 0.0
    %1225 = vmatprep.subr.mxu0 0.0
    %1226 = vmatpush1.msra.mxu0 0.0
    %1227 = vmatprep.subr.mxu0 0.0
    %1228 = vmatpush1.msra.mxu0 0.0
    %1229 = vmatprep.subr.mxu0 0.0
    %1230 = vmatpush1.msra.mxu0 0.0
    %1231 = vmatprep.subr.mxu0 0.0
    %1232 = vmatpush1.msra.mxu0 0.0
    %1233 = vmatprep.subr.mxu0 0.0
    %1234 = vmatpush1.msra.mxu0 0.0
    %1235 = vmatprep.subr.mxu0 0.0
    %1236 = vmatpush1.msra.mxu0 0.0
    %1237 = vmatprep.subr.mxu0 0.0
    %1238 = vmatpush1.msra.mxu0 0.0
    %1239 = vmatprep.subr.mxu0 0.0
    %1240 = vmatpush1.msra.mxu0 0.0
    %1241 = vmatprep.subr.mxu0 0.0
    %1242 = vmatpush1.msra.mxu0 0.0
    %1243 = vmatprep.subr.mxu0 0.0
    %1244 = vmatpush1.msra.mxu0 0.0
    %1245 = vmatprep.subr.mxu0 0.0
    %1246 = vmatpush1.msra.mxu0 0.0
    %1247 = vmatprep.subr.mxu0 0.0
    %1248 = vmatpush1.msra.mxu0 0.0
    %1249 = vmatprep.subr.mxu0 0.0
    %1250 = vmatpush1.msra.mxu0 0.0
    %1251 = vmatprep.subr.mxu0 0.0
    %1252 = vmatpush1.msra.mxu0 0.0
    %1253 = vmatprep.subr.mxu0 0.0
    %1254 = vmatpush1.msra.mxu0 0.0
    %1255 = vmatprep.subr.mxu0 0.0
    %1256 = vmatpush1.msra.mxu0 0.0
    %1257 = vmatprep.subr.mxu0 0.0
    %1258 = vmatpush1.msra.mxu0 0.0
    %1259 = vmatprep.subr.mxu0 0.0
    %1260 = vmatpush1.msra.mxu0 0.0
    %1261 = vmatprep.subr.mxu0 0.0
    %1262 = vmatpush1.msra.mxu0 0.0
    %1263 = vmatprep.subr.mxu0 0.0
    %1264 = vmatpush1.msra.mxu0 0.0
    %1265 = vmatprep.subr.mxu0 0.0
    %1266 = vmatpush1.msra.mxu0 0.0
    %1267 = vmatprep.subr.mxu0 0.0
    %1268 = vmatpush1.msra.mxu0 0.0
    %1269 = vmatprep.subr.mxu0 0.0
    %1270 = vmatpush1.msra.mxu0 0.0
    %1271 = vmatprep.mubr.f32.mxu0 0.0
    %1272 = vmatmul.mubr.f32.gmra.mrb[0].mxu0 %v1205
    %v1273 = vpop.f32.mrb[0].mxu0
    %v1274 = vadd.f32 0.0, %v1273
    %v1275 = vpop.f32.mrb[0].mxu0
    %1276 = vdwg.mxu0
    %1277 = vrot.lane.b32.xlu0 %v147, 64
    %v1278 = vpop.permute.xlu0 %1277
    %v1281 = vsel %vm202, %v894, 0
    %1283 = vmatprep.subr.mxu0 0.0
    %1284 = vmatpush1.msra.mxu0 %v1278
    %1285 = vmatprep.subr.mxu0 0.0
    %1286 = vmatpush1.msra.mxu0 0.0
    %1287 = vmatprep.subr.mxu0 0.0
    %1288 = vmatpush1.msra.mxu0 0.0
    %1289 = vmatprep.subr.mxu0 0.0
    %1290 = vmatpush1.msra.mxu0 0.0
    %1291 = vmatprep.subr.mxu0 0.0
    %1292 = vmatpush1.msra.mxu0 0.0
    %1293 = vmatprep.subr.mxu0 0.0
    %1294 = vmatpush1.msra.mxu0 0.0
    %1295 = vmatprep.subr.mxu0 0.0
    %1296 = vmatpush1.msra.mxu0 0.0
    %1297 = vmatprep.subr.mxu0 0.0
    %1298 = vmatpush1.msra.mxu0 0.0
    %1299 = vmatprep.subr.mxu0 0.0
    %1300 = vmatpush1.msra.mxu0 0.0
    %1301 = vmatprep.subr.mxu0 0.0
    %1302 = vmatpush1.msra.mxu0 0.0
    %1303 = vmatprep.subr.mxu0 0.0
    %1304 = vmatpush1.msra.mxu0 0.0
    %1305 = vmatprep.subr.mxu0 0.0
    %1306 = vmatpush1.msra.mxu0 0.0
    %1307 = vmatprep.subr.mxu0 0.0
    %1308 = vmatpush1.msra.mxu0 0.0
    %1309 = vmatprep.subr.mxu0 0.0
    %1310 = vmatpush1.msra.mxu0 0.0
    %1311 = vmatprep.subr.mxu0 0.0
    %1312 = vmatpush1.msra.mxu0 0.0
    %1313 = vmatprep.subr.mxu0 0.0
    %1314 = vmatpush1.msra.mxu0 0.0
    %1315 = vmatprep.subr.mxu0 0.0
    %1316 = vmatpush1.msra.mxu0 0.0
    %1317 = vmatprep.subr.mxu0 0.0
    %1318 = vmatpush1.msra.mxu0 0.0
    %1319 = vmatprep.subr.mxu0 0.0
    %1320 = vmatpush1.msra.mxu0 0.0
    %1321 = vmatprep.subr.mxu0 0.0
    %1322 = vmatpush1.msra.mxu0 0.0
    %1323 = vmatprep.subr.mxu0 0.0
    %1324 = vmatpush1.msra.mxu0 0.0
    %1325 = vmatprep.subr.mxu0 0.0
    %1326 = vmatpush1.msra.mxu0 0.0
    %1327 = vmatprep.subr.mxu0 0.0
    %1328 = vmatpush1.msra.mxu0 0.0
    %1329 = vmatprep.subr.mxu0 0.0
    %1330 = vmatpush1.msra.mxu0 0.0
    %1331 = vmatprep.subr.mxu0 0.0
    %1332 = vmatpush1.msra.mxu0 0.0
    %1333 = vmatprep.subr.mxu0 0.0
    %1334 = vmatpush1.msra.mxu0 0.0
    %1335 = vmatprep.subr.mxu0 0.0
    %1336 = vmatpush1.msra.mxu0 0.0
    %1337 = vmatprep.subr.mxu0 0.0
    %1338 = vmatpush1.msra.mxu0 0.0
    %1339 = vmatprep.subr.mxu0 0.0
    %1340 = vmatpush1.msra.mxu0 0.0
    %1341 = vmatprep.subr.mxu0 0.0
    %1342 = vmatpush1.msra.mxu0 0.0
    %1343 = vmatprep.subr.mxu0 0.0
    %1344 = vmatpush1.msra.mxu0 0.0
    %1345 = vmatprep.subr.mxu0 0.0
    %1346 = vmatpush1.msra.mxu0 0.0
    %1347 = vmatprep.mubr.f32.mxu0 0.0
    %1348 = vmatmul.mubr.f32.gmra.mrb[0].mxu0 %v1281
    %v1349 = vpop.f32.mrb[0].mxu0
    %v1350 = vadd.f32 0.0, %v1349
    %v1351 = vpop.f32.mrb[0].mxu0
    %1352 = vdwg.mxu0
    %1353 = vrot.lane.b32.xlu0 %v149, 64
    %v1354 = vpop.permute.xlu0 %1353
    %v1357 = vsel %vm202, %v895, 0
    %1359 = vmatprep.subr.mxu0 0.0
    %1360 = vmatpush1.msra.mxu0 %v1354
    %1361 = vmatprep.subr.mxu0 0.0
    %1362 = vmatpush1.msra.mxu0 0.0
    %1363 = vmatprep.subr.mxu0 0.0
    %1364 = vmatpush1.msra.mxu0 0.0
    %1365 = vmatprep.subr.mxu0 0.0
    %1366 = vmatpush1.msra.mxu0 0.0
    %1367 = vmatprep.subr.mxu0 0.0
    %1368 = vmatpush1.msra.mxu0 0.0
    %1369 = vmatprep.subr.mxu0 0.0
    %1370 = vmatpush1.msra.mxu0 0.0
    %1371 = vmatprep.subr.mxu0 0.0
    %1372 = vmatpush1.msra.mxu0 0.0
    %1373 = vmatprep.subr.mxu0 0.0
    %1374 = vmatpush1.msra.mxu0 0.0
    %1375 = vmatprep.subr.mxu0 0.0
    %1376 = vmatpush1.msra.mxu0 0.0
    %1377 = vmatprep.subr.mxu0 0.0
    %1378 = vmatpush1.msra.mxu0 0.0
    %1379 = vmatprep.subr.mxu0 0.0
    %1380 = vmatpush1.msra.mxu0 0.0
    %1381 = vmatprep.subr.mxu0 0.0
    %1382 = vmatpush1.msra.mxu0 0.0
    %1383 = vmatprep.subr.mxu0 0.0
    %1384 = vmatpush1.msra.mxu0 0.0
    %1385 = vmatprep.subr.mxu0 0.0
    %1386 = vmatpush1.msra.mxu0 0.0
    %1387 = vmatprep.subr.mxu0 0.0
    %1388 = vmatpush1.msra.mxu0 0.0
    %1389 = vmatprep.subr.mxu0 0.0
    %1390 = vmatpush1.msra.mxu0 0.0
    %1391 = vmatprep.subr.mxu0 0.0
    %1392 = vmatpush1.msra.mxu0 0.0
    %1393 = vmatprep.subr.mxu0 0.0
    %1394 = vmatpush1.msra.mxu0 0.0
    %1395 = vmatprep.subr.mxu0 0.0
    %1396 = vmatpush1.msra.mxu0 0.0
    %1397 = vmatprep.subr.mxu0 0.0
    %1398 = vmatpush1.msra.mxu0 0.0
    %1399 = vmatprep.subr.mxu0 0.0
    %1400 = vmatpush1.msra.mxu0 0.0
    %1401 = vmatprep.subr.mxu0 0.0
    %1402 = vmatpush1.msra.mxu0 0.0
    %1403 = vmatprep.subr.mxu0 0.0
    %1404 = vmatpush1.msra.mxu0 0.0
    %1405 = vmatprep.subr.mxu0 0.0
    %1406 = vmatpush1.msra.mxu0 0.0
    %1407 = vmatprep.subr.mxu0 0.0
    %1408 = vmatpush1.msra.mxu0 0.0
    %1409 = vmatprep.subr.mxu0 0.0
    %1410 = vmatpush1.msra.mxu0 0.0
    %1411 = vmatprep.subr.mxu0 0.0
    %1412 = vmatpush1.msra.mxu0 0.0
    %1413 = vmatprep.subr.mxu0 0.0
    %1414 = vmatpush1.msra.mxu0 0.0
    %1415 = vmatprep.subr.mxu0 0.0
    %1416 = vmatpush1.msra.mxu0 0.0
    %1417 = vmatprep.subr.mxu0 0.0
    %1418 = vmatpush1.msra.mxu0 0.0
    %1419 = vmatprep.subr.mxu0 0.0
    %1420 = vmatpush1.msra.mxu0 0.0
    %1421 = vmatprep.subr.mxu0 0.0
    %1422 = vmatpush1.msra.mxu0 0.0
    %1423 = vmatprep.mubr.f32.mxu0 0.0
    %1424 = vmatmul.mubr.f32.gmra.mrb[0].mxu0 %v1357
    %v1425 = vpop.f32.mrb[0].mxu0
    %v1426 = vadd.f32 0.0, %v1425
    %v1427 = vpop.f32.mrb[0].mxu0
    %1428 = vdwg.mxu0
    %1429 = vrot.lane.b32.xlu0 %v151, 64
    %v1430 = vpop.permute.xlu0 %1429
    %v1433 = vsel %vm202, %v896, 0
    %1435 = vmatprep.subr.mxu0 0.0
    %1436 = vmatpush1.msra.mxu0 %v1430
    %1437 = vmatprep.subr.mxu0 0.0
    %1438 = vmatpush1.msra.mxu0 0.0
    %1439 = vmatprep.subr.mxu0 0.0
    %1440 = vmatpush1.msra.mxu0 0.0
    %1441 = vmatprep.subr.mxu0 0.0
    %1442 = vmatpush1.msra.mxu0 0.0
    %1443 = vmatprep.subr.mxu0 0.0
    %1444 = vmatpush1.msra.mxu0 0.0
    %1445 = vmatprep.subr.mxu0 0.0
    %1446 = vmatpush1.msra.mxu0 0.0
    %1447 = vmatprep.subr.mxu0 0.0
    %1448 = vmatpush1.msra.mxu0 0.0
    %1449 = vmatprep.subr.mxu0 0.0
    %1450 = vmatpush1.msra.mxu0 0.0
    %1451 = vmatprep.subr.mxu0 0.0
    %1452 = vmatpush1.msra.mxu0 0.0
    %1453 = vmatprep.subr.mxu0 0.0
    %1454 = vmatpush1.msra.mxu0 0.0
    %1455 = vmatprep.subr.mxu0 0.0
    %1456 = vmatpush1.msra.mxu0 0.0
    %1457 = vmatprep.subr.mxu0 0.0
    %1458 = vmatpush1.msra.mxu0 0.0
    %1459 = vmatprep.subr.mxu0 0.0
    %1460 = vmatpush1.msra.mxu0 0.0
    %1461 = vmatprep.subr.mxu0 0.0
    %1462 = vmatpush1.msra.mxu0 0.0
    %1463 = vmatprep.subr.mxu0 0.0
    %1464 = vmatpush1.msra.mxu0 0.0
    %1465 = vmatprep.subr.mxu0 0.0
    %1466 = vmatpush1.msra.mxu0 0.0
    %1467 = vmatprep.subr.mxu0 0.0
    %1468 = vmatpush1.msra.mxu0 0.0
    %1469 = vmatprep.subr.mxu0 0.0
    %1470 = vmatpush1.msra.mxu0 0.0
    %1471 = vmatprep.subr.mxu0 0.0
    %1472 = vmatpush1.msra.mxu0 0.0
    %1473 = vmatprep.subr.mxu0 0.0
    %1474 = vmatpush1.msra.mxu0 0.0
    %1475 = vmatprep.subr.mxu0 0.0
    %1476 = vmatpush1.msra.mxu0 0.0
    %1477 = vmatprep.subr.mxu0 0.0
    %1478 = vmatpush1.msra.mxu0 0.0
    %1479 = vmatprep.subr.mxu0 0.0
    %1480 = vmatpush1.msra.mxu0 0.0
    %1481 = vmatprep.subr.mxu0 0.0
    %1482 = vmatpush1.msra.mxu0 0.0
    %1483 = vmatprep.subr.mxu0 0.0
    %1484 = vmatpush1.msra.mxu0 0.0
    %1485 = vmatprep.subr.mxu0 0.0
    %1486 = vmatpush1.msra.mxu0 0.0
    %1487 = vmatprep.subr.mxu0 0.0
    %1488 = vmatpush1.msra.mxu0 0.0
    %1489 = vmatprep.subr.mxu0 0.0
    %1490 = vmatpush1.msra.mxu0 0.0
    %1491 = vmatprep.subr.mxu0 0.0
    %1492 = vmatpush1.msra.mxu0 0.0
    %1493 = vmatprep.subr.mxu0 0.0
    %1494 = vmatpush1.msra.mxu0 0.0
    %1495 = vmatprep.subr.mxu0 0.0
    %1496 = vmatpush1.msra.mxu0 0.0
    %1497 = vmatprep.subr.mxu0 0.0
    %1498 = vmatpush1.msra.mxu0 0.0
    %1499 = vmatprep.mubr.f32.mxu0 0.0
    %1500 = vmatmul.mubr.f32.gmra.mrb[0].mxu0 %v1433
    %v1501 = vpop.f32.mrb[0].mxu0
    %v1502 = vadd.f32 0.0, %v1501
    %v1503 = vpop.f32.mrb[0].mxu0
    %1504 = vdwg.mxu0
    %1506 = vrot.lane.b32.xlu0 %v1046, 8
    %v1507 = vpop.permute.xlu0 %1506
    %1510 = vrot.lane.b32.xlu0 %v1122, 16
    %v1511 = vpop.permute.xlu0 %1510
    %1514 = vrot.lane.b32.xlu0 %v1198, 24
    %v1515 = vpop.permute.xlu0 %1514
    %v1517 = vsel %vm202, %v970, %v1507
    %vm1518 = vcmask 130048
    %v1519 = vsel %vm1518, %v1517, %v1511
    %vm1520 = vcmask 195584
    %v1521 = vsel %vm1520, %v1519, %v1515
    %1523 = vrot.lane.b32.xlu0 %v1350, 8
    %v1524 = vpop.permute.xlu0 %1523
    %1527 = vrot.lane.b32.xlu0 %v1426, 16
    %v1528 = vpop.permute.xlu0 %1527
    %1531 = vrot.lane.b32.xlu0 %v1502, 24
    %v1532 = vpop.permute.xlu0 %1531
    %v1534 = vsel %vm202, %v1274, %v1524
    %v1535 = vsel %vm1518, %v1534, %v1528
    %v1536 = vsel %vm1520, %v1535, %v1532
    %v1537 = vld [vmem:[%s3] sm:$0xff]
    %v1538 = vld [vmem:[%s3 + $0x8] sm:$0xff]
    %v1539 = vld [vmem:[%s3 + $0x10] sm:$0xff]
    %v1540 = vld [vmem:[%s3 + $0x18] sm:$0xff]
    %v1542 = vsel %vm56, %v1521, 0
    %v1545 = vsel %vm56, %v1536, 0
    %1547 = vmatprep.subr.mxu0 0.0
    %1548 = vmatpush1.msra.mxu0 %v1537
    %1549 = vmatprep.subr.mxu0 0.0
    %1550 = vmatpush1.msra.mxu0 %v1538
    %1551 = vmatprep.subr.mxu0 0.0
    %1552 = vmatpush1.msra.mxu0 %v1539
    %1553 = vmatprep.subr.mxu0 0.0
    %1554 = vmatpush1.msra.mxu0 %v1540
    %1555 = vmatprep.subr.mxu0 0.0
    %1556 = vmatpush1.msra.mxu0 0.0
    %1557 = vmatprep.subr.mxu0 0.0
    %1558 = vmatpush1.msra.mxu0 0.0
    %1559 = vmatprep.subr.mxu0 0.0
    %1560 = vmatpush1.msra.mxu0 0.0
    %1561 = vmatprep.subr.mxu0 0.0
    %1562 = vmatpush1.msra.mxu0 0.0
    %1563 = vmatprep.subr.mxu0 0.0
    %1564 = vmatpush1.msra.mxu0 0.0
    %1565 = vmatprep.subr.mxu0 0.0
    %1566 = vmatpush1.msra.mxu0 0.0
    %1567 = vmatprep.subr.mxu0 0.0
    %1568 = vmatpush1.msra.mxu0 0.0
    %1569 = vmatprep.subr.mxu0 0.0
    %1570 = vmatpush1.msra.mxu0 0.0
    %1571 = vmatprep.subr.mxu0 0.0
    %1572 = vmatpush1.msra.mxu0 0.0
    %1573 = vmatprep.subr.mxu0 0.0
    %1574 = vmatpush1.msra.mxu0 0.0
    %1575 = vmatprep.subr.mxu0 0.0
    %1576 = vmatpush1.msra.mxu0 0.0
    %1577 = vmatprep.subr.mxu0 0.0
    %1578 = vmatpush1.msra.mxu0 0.0
    %1579 = vmatprep.subr.mxu0 0.0
    %1580 = vmatpush1.msra.mxu0 0.0
    %1581 = vmatprep.subr.mxu0 0.0
    %1582 = vmatpush1.msra.mxu0 0.0
    %1583 = vmatprep.subr.mxu0 0.0
    %1584 = vmatpush1.msra.mxu0 0.0
    %1585 = vmatprep.subr.mxu0 0.0
    %1586 = vmatpush1.msra.mxu0 0.0
    %1587 = vmatprep.subr.mxu0 0.0
    %1588 = vmatpush1.msra.mxu0 0.0
    %1589 = vmatprep.subr.mxu0 0.0
    %1590 = vmatpush1.msra.mxu0 0.0
    %1591 = vmatprep.subr.mxu0 0.0
    %1592 = vmatpush1.msra.mxu0 0.0
    %1593 = vmatprep.subr.mxu0 0.0
    %1594 = vmatpush1.msra.mxu0 0.0
    %1595 = vmatprep.subr.mxu0 0.0
    %1596 = vmatpush1.msra.mxu0 0.0
    %1597 = vmatprep.subr.mxu0 0.0
    %1598 = vmatpush1.msra.mxu0 0.0
    %1599 = vmatprep.subr.mxu0 0.0
    %1600 = vmatpush1.msra.mxu0 0.0
    %1601 = vmatprep.subr.mxu0 0.0
    %1602 = vmatpush1.msra.mxu0 0.0
    %1603 = vmatprep.subr.mxu0 0.0
    %1604 = vmatpush1.msra.mxu0 0.0
    %1605 = vmatprep.subr.mxu0 0.0
    %1606 = vmatpush1.msra.mxu0 0.0
    %1607 = vmatprep.subr.mxu0 0.0
    %1608 = vmatpush1.msra.mxu0 0.0
    %1609 = vmatprep.subr.mxu0 0.0
    %1610 = vmatpush1.msra.mxu0 0.0
    %1611 = vmatprep.mubr.f32.mxu0 0.0
    %1612 = vmatmul.mubr.f32.gmra.mrb[0].mxu0 %v1542
    %v1613 = vpop.f32.mrb[0].mxu0
    %v1614 = vadd.f32 0.0, %v1613
    %v1615 = vpop.f32.mrb[0].mxu0
    %1616 = vmatprep.mubr.f32.mxu0 0.0
    %1617 = vmatmul.mubr.f32.gmra.mrb[0].mxu0 %v1545
    %v1618 = vpop.f32.mrb[0].mxu0
    %v1619 = vadd.f32 0.0, %v1618
    %v1620 = vpop.f32.mrb[0].mxu0
    %1621 = vdwg.mxu0
    %v1622 = vadd.f32 %v42, %v1614
    %v1623 = vadd.f32 %v43, %v1619
    %v1624 = vld [vmem:[%s8] sm:$0x1]
    %v1625 = vld [vmem:[%s9] sm:$0x1]
    %v1626 = vsel %vm56, %v1622, 0.0
    %1627 = vadd.xlane.f32.xlu0 %v1626
    %v1628 = vpop.xlane.xlu0 %1627
    %v1629 = vsel %vm56, %v1623, 0.0
    %1630 = vadd.xlane.f32.xlu0 %v1629
    %v1631 = vpop.xlane.xlu0 %1630
    %v1632 = vrcp.pop 32.0
    %v1633 = vmul.f32 %v1628, %v1632
    %v1634 = vmul.f32 %v1631, %v1632
    %v1635 = vsub.f32 %v1622, %v1633
    %v1636 = vsub.f32 %v1623, %v1634
    %v1637 = vmul.f32 %v1635, %v1635
    %v1638 = vmul.f32 %v1636, %v1636
    %v1639 = vsel %vm56, %v1637, 0.0
    %1640 = vadd.xlane.f32.xlu0 %v1639
    %v1641 = vpop.xlane.xlu0 %1640
    %v1642 = vsel %vm56, %v1638, 0.0
    %1643 = vadd.xlane.f32.xlu0 %v1642
    %v1644 = vpop.xlane.xlu0 %1643
    %v1645 = vmul.f32 %v1641, %v1632
    %v1646 = vmul.f32 %v1644, %v1632
    %v1647 = vadd.f32 %v1645, 1e-05
    %v1648 = vadd.f32 %v1646, 1e-05
    %v1649 = vrsqrt.pop %v1647
    %v1650 = vrsqrt.pop %v1648
    %v1651 = vmul.f32 %v1635, %v1649
    %v1652 = vmul.f32 %v1636, %v1650
    %v1654 = vlaneseq
    %v1655 = vshrl.u32 %v1654, 7
    %v1656 = vsub.s32 0, %v1655
    %v1657 = vrot.slane %v1624, %v1656
    %v1659 = vmul.f32 %v1651, %v1657
    %v1660 = vmul.f32 %v1652, %v1657
    %v1662 = vlaneseq
    %v1663 = vshrl.u32 %v1662, 7
    %v1664 = vsub.s32 0, %v1663
    %v1665 = vrot.slane %v1625, %v1664
    %v1667 = vadd.f32 %v1659, %v1665
    %v1668 = vadd.f32 %v1660, %v1665
    %v1669 = vld [vmem:[%s4] sm:$0xff]
    %v1670 = vld [vmem:[%s4 + $0x8] sm:$0xff]
    %v1671 = vld [vmem:[%s4 + $0x10] sm:$0xff]
    %v1672 = vld [vmem:[%s4 + $0x18] sm:$0xff]
    %v1673 = vld [vmem:[%s5] sm:$0x1]
    %v1675 = vlaneseq
    %v1676 = vshrl.u32 %v1675, 7
    %v1677 = vsub.s32 0, %v1676
    %v1678 = vrot.slane %v1673, %v1677
    %v1681 = vsel %vm56, %v1667, 0
    %v1684 = vsel %vm56, %v1668, 0
    %1686 = vmatprep.subr.mxu0 0.0
    %1687 = vmatpush1.msra.mxu0 %v1669
    %1688 = vmatprep.subr.mxu0 0.0
    %1689 = vmatpush1.msra.mxu0 %v1670
    %1690 = vmatprep.subr.mxu0 0.0
    %1691 = vmatpush1.msra.mxu0 %v1671
    %1692 = vmatprep.subr.mxu0 0.0
    %1693 = vmatpush1.msra.mxu0 %v1672
    %1694 = vmatprep.subr.mxu0 0.0
    %1695 = vmatpush1.msra.mxu0 0.0
    %1696 = vmatprep.subr.mxu0 0.0
    %1697 = vmatpush1.msra.mxu0 0.0
    %1698 = vmatprep.subr.mxu0 0.0
    %1699 = vmatpush1.msra.mxu0 0.0
    %1700 = vmatprep.subr.mxu0 0.0
    %1701 = vmatpush1.msra.mxu0 0.0
    %1702 = vmatprep.subr.mxu0 0.0
    %1703 = vmatpush1.msra.mxu0 0.0
    %1704 = vmatprep.subr.mxu0 0.0
    %1705 = vmatpush1.msra.mxu0 0.0
    %1706 = vmatprep.subr.mxu0 0.0
    %1707 = vmatpush1.msra.mxu0 0.0
    %1708 = vmatprep.subr.mxu0 0.0
    %1709 = vmatpush1.msra.mxu0 0.0
    %1710 = vmatprep.subr.mxu0 0.0
    %1711 = vmatpush1.msra.mxu0 0.0
    %1712 = vmatprep.subr.mxu0 0.0
    %1713 = vmatpush1.msra.mxu0 0.0
    %1714 = vmatprep.subr.mxu0 0.0
    %1715 = vmatpush1.msra.mxu0 0.0
    %1716 = vmatprep.subr.mxu0 0.0
    %1717 = vmatpush1.msra.mxu0 0.0
    %1718 = vmatprep.subr.mxu0 0.0
    %1719 = vmatpush1.msra.mxu0 0.0
    %1720 = vmatprep.subr.mxu0 0.0
    %1721 = vmatpush1.msra.mxu0 0.0
    %1722 = vmatprep.subr.mxu0 0.0
    %1723 = vmatpush1.msra.mxu0 0.0
    %1724 = vmatprep.subr.mxu0 0.0
    %1725 = vmatpush1.msra.mxu0 0.0
    %1726 = vmatprep.subr.mxu0 0.0
    %1727 = vmatpush1.msra.mxu0 0.0
    %1728 = vmatprep.subr.mxu0 0.0
    %1729 = vmatpush1.msra.mxu0 0.0
    %1730 = vmatprep.subr.mxu0 0.0
    %1731 = vmatpush1.msra.mxu0 0.0
    %1732 = vmatprep.subr.mxu0 0.0
    %1733 = vmatpush1.msra.mxu0 0.0
    %1734 = vmatprep.subr.mxu0 0.0
    %1735 = vmatpush1.msra.mxu0 0.0
    %1736 = vmatprep.subr.mxu0 0.0
    %1737 = vmatpush1.msra.mxu0 0.0
    %1738 = vmatprep.subr.mxu0 0.0
    %1739 = vmatpush1.msra.mxu0 0.0
    %1740 = vmatprep.subr.mxu0 0.0
    %1741 = vmatpush1.msra.mxu0 0.0
    %1742 = vmatprep.subr.mxu0 0.0
    %1743 = vmatpush1.msra.mxu0 0.0
    %1744 = vmatprep.subr.mxu0 0.0
    %1745 = vmatpush1.msra.mxu0 0.0
    %1746 = vmatprep.subr.mxu0 0.0
    %1747 = vmatpush1.msra.mxu0 0.0
    %1748 = vmatprep.subr.mxu0 0.0
    %1749 = vmatpush1.msra.mxu0 0.0
    %1750 = vmatprep.mubr.f32.mxu0 0.0
    %1751 = vmatmul.mubr.f32.gmra.mrb[0].mxu0 %v1681
    %v1752 = vpop.f32.mrb[0].mxu0
    %v1753 = vadd.f32 %v1678, %v1752
    %v1754 = vpop.f32.mrb[0].mxu0
    %1755 = vmatprep.mubr.f32.mxu0 0.0
    %1756 = vmatmul.mubr.f32.gmra.mrb[0].mxu0 %v1684
    %v1757 = vpop.f32.mrb[0].mxu0
    %v1758 = vadd.f32 %v1678, %v1757
    %v1759 = vpop.f32.mrb[0].mxu0
    %1760 = vdwg.mxu0
    %v1761 = vmax.f32 %v1753, 0.0
    %v1762 = vmax.f32 %v1758, 0.0
    %v1763 = vld [vmem:[%s6] sm:$0xff]
    %v1764 = vld [vmem:[%s6 + $0x8] sm:$0xff]
    %v1765 = vld [vmem:[%s6 + $0x10] sm:$0xff]
    %v1766 = vld [vmem:[%s6 + $0x18] sm:$0xff]
    %v1767 = vld [vmem:[%s6 + $0x20] sm:$0xff]
    %v1768 = vld [vmem:[%s6 + $0x28] sm:$0xff]
    %v1769 = vld [vmem:[%s6 + $0x30] sm:$0xff]
    %v1770 = vld [vmem:[%s6 + $0x38] sm:$0xff]
    %v1771 = vld [vmem:[%s7] sm:$0x1]
    %v1773 = vlaneseq
    %v1774 = vshrl.u32 %v1773, 7
    %v1775 = vsub.s32 0, %v1774
    %v1776 = vrot.slane %v1771, %v1775
    %vm1778 = vcmask 523264
    %v1780 = vsel %vm1778, %v1761, 0
    %v1783 = vsel %vm1778, %v1762, 0
    %1785 = vmatprep.subr.mxu0 0.0
    %1786 = vmatpush1.msra.mxu0 %v1763
    %1787 = vmatprep.subr.mxu0 0.0
    %1788 = vmatpush1.msra.mxu0 %v1764
    %1789 = vmatprep.subr.mxu0 0.0
    %1790 = vmatpush1.msra.mxu0 %v1765
    %1791 = vmatprep.subr.mxu0 0.0
    %1792 = vmatpush1.msra.mxu0 %v1766
    %1793 = vmatprep.subr.mxu0 0.0
    %1794 = vmatpush1.msra.mxu0 %v1767
    %1795 = vmatprep.subr.mxu0 0.0
    %1796 = vmatpush1.msra.mxu0 %v1768
    %1797 = vmatprep.subr.mxu0 0.0
    %1798 = vmatpush1.msra.mxu0 %v1769
    %1799 = vmatprep.subr.mxu0 0.0
    %1800 = vmatpush1.msra.mxu0 %v1770
    %1801 = vmatprep.subr.mxu0 0.0
    %1802 = vmatpush1.msra.mxu0 0.0
    %1803 = vmatprep.subr.mxu0 0.0
    %1804 = vmatpush1.msra.mxu0 0.0
    %1805 = vmatprep.subr.mxu0 0.0
    %1806 = vmatpush1.msra.mxu0 0.0
    %1807 = vmatprep.subr.mxu0 0.0
    %1808 = vmatpush1.msra.mxu0 0.0
    %1809 = vmatprep.subr.mxu0 0.0
    %1810 = vmatpush1.msra.mxu0 0.0
    %1811 = vmatprep.subr.mxu0 0.0
    %1812 = vmatpush1.msra.mxu0 0.0
    %1813 = vmatprep.subr.mxu0 0.0
    %1814 = vmatpush1.msra.mxu0 0.0
    %1815 = vmatprep.subr.mxu0 0.0
    %1816 = vmatpush1.msra.mxu0 0.0
    %1817 = vmatprep.subr.mxu0 0.0
    %1818 = vmatpush1.msra.mxu0 0.0
    %1819 = vmatprep.subr.mxu0 0.0
    %1820 = vmatpush1.msra.mxu0 0.0
    %1821 = vmatprep.subr.mxu0 0.0
    %1822 = vmatpush1.msra.mxu0 0.0
    %1823 = vmatprep.subr.mxu0 0.0
    %1824 = vmatpush1.msra.mxu0 0.0
    %1825 = vmatprep.subr.mxu0 0.0
    %1826 = vmatpush1.msra.mxu0 0.0
    %1827 = vmatprep.subr.mxu0 0.0
    %1828 = vmatpush1.msra.mxu0 0.0
    %1829 = vmatprep.subr.mxu0 0.0
    %1830 = vmatpush1.msra.mxu0 0.0
    %1831 = vmatprep.subr.mxu0 0.0
    %1832 = vmatpush1.msra.mxu0 0.0
    %1833 = vmatprep.subr.mxu0 0.0
    %1834 = vmatpush1.msra.mxu0 0.0
    %1835 = vmatprep.subr.mxu0 0.0
    %1836 = vmatpush1.msra.mxu0 0.0
    %1837 = vmatprep.subr.mxu0 0.0
    %1838 = vmatpush1.msra.mxu0 0.0
    %1839 = vmatprep.subr.mxu0 0.0
    %1840 = vmatpush1.msra.mxu0 0.0
    %1841 = vmatprep.subr.mxu0 0.0
    %1842 = vmatpush1.msra.mxu0 0.0
    %1843 = vmatprep.subr.mxu0 0.0
    %1844 = vmatpush1.msra.mxu0 0.0
    %1845 = vmatprep.subr.mxu0 0.0
    %1846 = vmatpush1.msra.mxu0 0.0
    %1847 = vmatprep.subr.mxu0 0.0
    %1848 = vmatpush1.msra.mxu0 0.0
    %1849 = vmatprep.mubr.f32.mxu0 0.0
    %1850 = vmatmul.mubr.f32.gmra.mrb[0].mxu0 %v1780
    %v1851 = vpop.f32.mrb[0].mxu0
    %v1852 = vadd.f32 %v1776, %v1851
    %v1853 = vpop.f32.mrb[0].mxu0
    %1854 = vmatprep.mubr.f32.mxu0 0.0
    %1855 = vmatmul.mubr.f32.gmra.mrb[0].mxu0 %v1783
    %v1856 = vpop.f32.mrb[0].mxu0
    %v1857 = vadd.f32 %v1776, %v1856
    %v1858 = vpop.f32.mrb[0].mxu0
    %1859 = vdwg.mxu0
    %v1860 = vadd.f32 %v1667, %v1852
    %v1861 = vadd.f32 %v1668, %v1857
    %v1862 = vld [vmem:[%s10] sm:$0x1]
    %v1863 = vld [vmem:[%s11] sm:$0x1]
    %v1864 = vsel %vm56, %v1860, 0.0
    %1865 = vadd.xlane.f32.xlu0 %v1864
    %v1866 = vpop.xlane.xlu0 %1865
    %v1867 = vsel %vm56, %v1861, 0.0
    %1868 = vadd.xlane.f32.xlu0 %v1867
    %v1869 = vpop.xlane.xlu0 %1868
    %v1870 = vmul.f32 %v1866, %v1632
    %v1871 = vmul.f32 %v1869, %v1632
    %v1872 = vsub.f32 %v1860, %v1870
    %v1873 = vsub.f32 %v1861, %v1871
    %v1874 = vmul.f32 %v1872, %v1872
    %v1875 = vmul.f32 %v1873, %v1873
    %v1876 = vsel %vm56, %v1874, 0.0
    %1877 = vadd.xlane.f32.xlu0 %v1876
    %v1878 = vpop.xlane.xlu0 %1877
    %v1879 = vsel %vm56, %v1875, 0.0
    %1880 = vadd.xlane.f32.xlu0 %v1879
    %v1881 = vpop.xlane.xlu0 %1880
    %v1882 = vmul.f32 %v1878, %v1632
    %v1883 = vmul.f32 %v1881, %v1632
    %v1884 = vadd.f32 %v1882, 1e-05
    %v1885 = vadd.f32 %v1883, 1e-05
    %v1886 = vrsqrt.pop %v1884
    %v1887 = vrsqrt.pop %v1885
    %v1888 = vmul.f32 %v1872, %v1886
    %v1889 = vmul.f32 %v1873, %v1887
    %v1891 = vlaneseq
    %v1892 = vshrl.u32 %v1891, 7
    %v1893 = vsub.s32 0, %v1892
    %v1894 = vrot.slane %v1862, %v1893
    %v1896 = vmul.f32 %v1888, %v1894
    %v1897 = vmul.f32 %v1889, %v1894
    %v1899 = vlaneseq
    %v1900 = vshrl.u32 %v1899, 7
    %v1901 = vsub.s32 0, %v1900
    %v1902 = vrot.slane %v1863, %v1901
    %v1904 = vadd.f32 %v1896, %v1902
    %v1905 = vadd.f32 %v1897, %v1902
    %1906 = vst.msk [vmem:[#allocation2] sm:$0xff] %vm56, %v1904
    %1907 = vst.msk [vmem:[#allocation2 + $0x8] sm:$0xff] %vm56, %v1905
    // Predicated region
    $region50: #{encoder_layer.1} parent=1 // pred_check
      _
    $region51: #{encoder_layer.1} parent=1 // pred_check_branch
      %1909 = sbr.rel (0) target = $region53
    $region52: #{encoder_layer.1} parent=1 // pred_region
      %s1911 = ssub.s32 256, 256
      %1912 = vsyncadd [#allocation3], %s1911
      %s1913 = sshll.u32 [#allocation2], 4
      %s1914 = int_to_ptr.vmem [resolvable:$true] %s1913
      %1919 = dma.vmem_to_hbm [thread:$0]  %s1914, 256, %s12, [#allocation3], 128, 128, 8
    $region53: #{encoder_layer.1} parent=1 // pred_fallthru
      _
    // Predicated region
    $region54: #{encoder_layer.1} parent=1 // pred_check
      _
    $region55: #{encoder_layer.1} parent=1 // pred_check_branch
      %1921 = sbr.rel (0) target = $region57
    $region56: #{encoder_layer.1} parent=1 // pred_region
      %1922 = dma.done [#allocation3], 256
    $region57: #{encoder_layer.1} parent=1 // pred_fallthru
      _
    %1923 = vsyncpa [#allocation3], 1

</llo_original>
